<compile_context>
chip_gen: v7x
topology: tpu7x:2x2x1
jax: 0.10.0
libtpu: 0.0.40
codegen_flags: <defaults>
</compile_context>

<pallas_src>
import math

import jax
import jax.numpy as jnp
from jax.experimental import pallas as pl
from jax.experimental.pallas import tpu as pltpu


# ---------------------------------------------------------------------------
# Fused Pallas kernel: phase-decomposed ConvTranspose2d + BN + ReLU
# ---------------------------------------------------------------------------
def _upsampler_kernel(xm_ref, xh_ref, w_ref, s_ref, t_ref, o_ref):
    # xm_ref: (bm, W+1, Cin)  bf16  rows [r0, r0+bm) of the zero-padded input
    # xh_ref: (1,  W+1, Cin)  bf16  halo row r0+bm (bottom zero row for last)
    # w_ref:  (4, Cin, 4*Cout) bf16 phase-decomposed conv weights (taps x phases)
    # s_ref:  (1, 4*Cout) f32      BN scale, tiled over the 4 phases
    # t_ref:  (1, 4*Cout) f32      bias/BN shift, tiled over the 4 phases
    # o_ref:  (bm, 2, W, 2*Cout)   output block (ph split over dim 1)
    bm, _, Cin = xm_ref.shape
    W = o_ref.shape[2]
    Co4 = w_ref.shape[2]
    half = Co4 // 2

    xm = xm_ref[...]                                  # (bm, W+1, Cin)
    xh = xh_ref[...]                                  # (1,  W+1, Cin)
    if bm > 1:
        xd = jnp.concatenate([xm[1:], xh], axis=0)    # rows shifted down by 1
    else:
        xd = xh

    def tap(x, dw):                                   # -> (bm*W, Cin)
        return x[:, dw:dw + W, :].reshape(bm * W, Cin)

    # 4 accumulated MXU matmuls (f32 accumulation).
    acc = jnp.dot(tap(xm, 0), w_ref[0], preferred_element_type=jnp.float32)
    acc = acc + jnp.dot(tap(xm, 1), w_ref[1], preferred_element_type=jnp.float32)
    acc = acc + jnp.dot(tap(xd, 0), w_ref[2], preferred_element_type=jnp.float32)
    acc = acc + jnp.dot(tap(xd, 1), w_ref[3], preferred_element_type=jnp.float32)

    # f32 epilogue: BatchNorm scale/shift (+ folded conv bias) and ReLU.
    acc = acc * s_ref[...] + t_ref[...]
    acc = jnp.maximum(acc, 0.0).reshape(bm, W, Co4)

    # Split the 4*Cout phase columns into the ph=0 / ph=1 halves and store in
    # (bm, 2, W, 2*Cout) layout -> final NHWC output is a pure reshape.
    o_ref[...] = jnp.stack([acc[:, :, :half], acc[:, :, half:]],
                           axis=1).astype(o_ref.dtype)


# ---------------------------------------------------------------------------
# Weight / block-size helpers
# ---------------------------------------------------------------------------
def _phase_weight(w_iohw):
    """[Cin, Cout, 3, 3] -> (4, Cin, 4*Cout) phase-decomposed weight.

    Leading dim = input tap (dh, dw) in {(0,0),(0,1),(1,0),(1,1)};
    columns     = output phase (ph, pw) in the same order (Cout each).
    For k=3, stride=2, padding=1, output_padding=1:
        out[2m+ph, 2n+pw] = sum_taps x[m+dh, n+dw] @ w[:, :, kh, kw]
    with the tap -> kernel-index mapping below (missing combos are zero);
    the output_padding row/col falls out of the bottom/right zero pad.
    """
    def t(kh, kw):
        return w_iohw[:, :, kh, kw]                    # [Cin, Cout]
    z = jnp.zeros_like(t(0, 0))
    taps = [
        # (ph,pw)=(0,0)  (0,1)     (1,0)     (1,1)
        [t(1, 1), t(1, 2), t(2, 1), t(2, 2)],          # tap (0,0)
        [z,       t(1, 0), z,       t(2, 0)],          # tap (0,1)
        [z,       z,       t(0, 1), t(0, 2)],          # tap (1,0)
        [z,       z,       z,       t(0, 0)],          # tap (1,1)
    ]
    return jnp.stack([jnp.concatenate(r, axis=1) for r in taps], axis=0)


def _pick_block_rows(B, H, W):
    """Largest divisor of H whose flattened matmul M-dim (bm*W) stays modest
    (small per-step VMEM working set); prefer >= 2 total grid steps so v7x's
    two TensorCores both get work."""
    divisors = [d for d in range(1, H + 1) if H % d == 0]
    fitting = [d for d in divisors if d * W <= 2048] or [divisors[0]]
    bm = fitting[-1]
    if B * (H // bm) < 2 and len(fitting) >= 2:
        bm = fitting[-2]
    return bm


# ---------------------------------------------------------------------------
# Forward passes
# ---------------------------------------------------------------------------
def upsampler_block_forward_nhwc(x_nhwc, params, out_dtype=jnp.bfloat16):
    """NHWC in -> NHWC out (bf16).  Use this end-to-end in an NHWC decoder to
    avoid any layout transposes around the kernel."""
    w, bias, bn = params["w"], params["b"], params["bn"]   # w: [Cin, Cout, 3, 3]
    Cin, Cout = w.shape[0], w.shape[1]
    B, H, W, _ = x_nhwc.shape
    Co4 = 4 * Cout
    Wp = W + 1

    # Fold BatchNorm (inference) + conv bias into per-channel f32 scale/shift.
    scale = bn["gamma"] * jax.lax.rsqrt(bn["rv"] + bn["eps"])      # [Cout]
    shift = (bias - bn["rm"]) * scale + bn["beta"]                 # [Cout]
    sbig = jnp.tile(scale, 4)[None, :].astype(jnp.float32)         # [1, 4Cout]
    tbig = jnp.tile(shift, 4)[None, :].astype(jnp.float32)         # [1, 4Cout]
    wbig = _phase_weight(w).astype(jnp.bfloat16)                   # [4,Cin,4Cout]

    # bf16 + one bottom/right zero row/col (the only XLA-side copy of x).
    if x_nhwc.dtype != jnp.bfloat16:
        x_nhwc = x_nhwc.astype(jnp.bfloat16)
    xp = jnp.pad(x_nhwc, ((0, 0), (0, 1), (0, 1), (0, 0)))         # (B,H+1,W+1,Cin)

    bm = _pick_block_rows(B, H, W)
    grid = (B, H // bm)

    cost = pl.CostEstimate(
        flops=2 * B * H * W * (4 * Cin) * Co4,
        transcendentals=0,
        bytes_accessed=(xp.size * 2 + wbig.size * 2
                        + B * H * 2 * W * 2 * Cout * jnp.dtype(out_dtype).itemsize),
    )

    y = pl.pallas_call(
        _upsampler_kernel,
        out_shape=jax.ShapeDtypeStruct((B, H, 2, W, 2 * Cout), out_dtype),
        grid=grid,
        in_specs=[
            # main row tile: rows [ri*bm, (ri+1)*bm)
            pl.BlockSpec((None, bm, Wp, Cin), lambda bi, ri: (bi, ri, 0, 0)),
            # 1-row halo: row (ri+1)*bm of the same padded array
            pl.BlockSpec((None, 1, Wp, Cin),
                         lambda bi, ri: (bi, (ri + 1) * bm, 0, 0)),
            pl.BlockSpec((4, Cin, Co4), lambda bi, ri: (0, 0, 0)),
            pl.BlockSpec((1, Co4), lambda bi, ri: (0, 0)),
            pl.BlockSpec((1, Co4), lambda bi, ri: (0, 0)),
        ],
        out_specs=pl.BlockSpec((None, bm, 2, W, 2 * Cout),
                               lambda bi, ri: (bi, ri, 0, 0, 0)),
        compiler_params=pltpu.CompilerParams(
            dimension_semantics=("parallel", "parallel")),
        cost_estimate=cost,
    )(xp, xp, wbig, sbig, tbig)

    # (B, H, 2, W, 2*Cout) -> (B, 2H, 2W, Cout): pure row-major reshape.
    return y.reshape(B, 2 * H, 2 * W, Cout)


@jax.jit
def upsampler_block_forward(x_nchw, params):
    """NCHW-compatible wrapper matching the PyTorch module's I/O layout."""
    x = jnp.transpose(x_nchw.astype(jnp.bfloat16), (0, 2, 3, 1))   # NCHW->NHWC
    y = upsampler_block_forward_nhwc(x, params)                    # (B,2H,2W,Cout)
    return jnp.transpose(y, (0, 3, 1, 2))                          # NHWC->NCHW


# ---------------------------------------------------------------------------
# Pure-JAX reference (ConvTranspose2d via lhs-dilated conv) for validation.
# ---------------------------------------------------------------------------
def reference_forward(x_nchw, params):
    w, b, bn = params["w"], params["b"], params["bn"]
    # Match the kernel's bf16 rounding of the matmul operands.
    x = x_nchw.astype(jnp.bfloat16).astype(jnp.float32)
    wf = w.astype(jnp.bfloat16).astype(jnp.float32)
    w_oihw = jnp.transpose(jnp.flip(wf, (2, 3)), (1, 0, 2, 3))     # [Cout,Cin,3,3]
    y = jax.lax.conv_general_dilated(
        x, w_oihw, window_strides=(1, 1), padding=[(1, 2), (1, 2)],
        lhs_dilation=(2, 2), dimension_numbers=("NCHW", "OIHW", "NCHW"))
    y = y + b[None, :, None, None]
    s = bn["gamma"] * jax.lax.rsqrt(bn["rv"] + bn["eps"])
    y = (y - bn["rm"][None, :, None, None]) * s[None, :, None, None] \
        + bn["beta"][None, :, None, None]
    return jnp.maximum(y, 0.0)


# ---------------------------------------------------------------------------
# Deterministic synthetic parameters
# ---------------------------------------------------------------------------
def init_params(key, cin, cout):
    k = jax.random.split(key, 6)
    w = jax.random.normal(k[0], (cin, cout, 3, 3), jnp.float32) \
        / math.sqrt(cin * 9)                                       # IOHW
    b = 0.05 * jax.random.normal(k[1], (cout,), jnp.float32)
    bn = dict(
        gamma=1.0 + 0.1 * jax.random.normal(k[2], (cout,), jnp.float32),
        beta=0.1 * jax.random.normal(k[3], (cout,), jnp.float32),
        rm=0.1 * jax.random.normal(k[4], (cout,), jnp.float32),
        rv=1.0 + jnp.abs(0.1 * jax.random.normal(k[5], (cout,), jnp.float32)),
        eps=1e-3,
    )
    return dict(w=w, b=b, bn=bn)


if __name__ == "__main__":
    key = jax.random.PRNGKey(0)
    pkey, xkey = jax.random.split(key)

    CIN, COUT = 128, 64          # ERFNet decoder usage: UpsamplerBlock(128, 64)
    params = init_params(pkey, CIN, COUT)
    x = jax.random.normal(xkey, (2, CIN, 16, 16), jnp.float32)

    out = upsampler_block_forward(x, params)
    jax.block_until_ready(out)

    assert out.shape == (2, COUT, 32, 32), out.shape
    out_f32 = out.astype(jnp.float32)
    assert bool(jnp.all(jnp.isfinite(out_f32)))
    assert bool(jnp.all(out_f32 >= 0.0))              # ReLU output

    ref = reference_forward(x, params)
    err = float(jnp.max(jnp.abs(out_f32 - ref)))
    scl = float(jnp.max(jnp.abs(ref))) + 1.0
    assert err <= 5e-2 * scl, (err, scl)              # bf16 matmul/output tolerance

    print("KERNEL_OK")
</pallas_src>

<mosaic_0001>
module attributes {stable_mosaic.version = 11 : i64} {
  func.func @_upsampler_kernel(%arg0: i32, %arg1: i32, %arg2: memref<1x16x17x128xbf16, #tpu.memory_space<vmem>>, %arg3: memref<1x1x17x128xbf16, #tpu.memory_space<vmem>>, %arg4: memref<4x128x256xbf16, #tpu.memory_space<vmem>>, %arg5: memref<1x256xf32, #tpu.memory_space<vmem>>, %arg6: memref<1x256xf32, #tpu.memory_space<vmem>>, %arg7: memref<1x16x2x16x128xbf16, #tpu.memory_space<vmem>>) attributes {dimension_semantics = [#tpu.dimension_semantics<parallel>, #tpu.dimension_semantics<parallel>], iteration_bounds = array<i64: 2, 1>, scalar_prefetch = 0 : i64, scratch_operands = 0 : i64, tpu.core_type = #tpu.core_type<tc>, window_params = [{transform_indices = @transform_0, window_bounds = array<i64: 1, 16, 17, 128>}, {transform_indices = @transform_1, window_bounds = array<i64: 1, 1, 17, 128>}, {pipeline_mode = #tpu.pipeline_mode<synchronous>, transform_indices = @transform_2, window_bounds = array<i64: 4, 128, 256>}, {pipeline_mode = #tpu.pipeline_mode<synchronous>, transform_indices = @transform_3, window_bounds = array<i64: 1, 256>}, {pipeline_mode = #tpu.pipeline_mode<synchronous>, transform_indices = @transform_4, window_bounds = array<i64: 1, 256>}, {transform_indices = @transform_5, window_bounds = array<i64: 1, 16, 2, 16, 128>}]} {
    %c0 = arith.constant 0 : index
    %c0_0 = arith.constant 0 : index
    %c0_1 = arith.constant 0 : index
    %c0_2 = arith.constant 0 : index
    %0 = vector.load %arg2[%c0, %c0_0, %c0_1, %c0_2] : memref<1x16x17x128xbf16, #tpu.memory_space<vmem>>, vector<1x16x17x128xbf16>
    %1 = vector.shape_cast %0 : vector<1x16x17x128xbf16> to vector<16x17x128xbf16>
    %c0_3 = arith.constant 0 : index
    %c0_4 = arith.constant 0 : index
    %c0_5 = arith.constant 0 : index
    %c0_6 = arith.constant 0 : index
    %2 = vector.load %arg3[%c0_3, %c0_4, %c0_5, %c0_6] : memref<1x1x17x128xbf16, #tpu.memory_space<vmem>>, vector<1x1x17x128xbf16>
    %3 = vector.shape_cast %2 : vector<1x1x17x128xbf16> to vector<1x17x128xbf16>
    %4 = vector.extract_strided_slice %1 {offsets = [1, 0, 0], sizes = [15, 17, 128], strides = [1, 1, 1]} : vector<16x17x128xbf16> to vector<15x17x128xbf16>
    %5 = tpu.concatenate %4, %3 in 0 : vector<15x17x128xbf16>, vector<1x17x128xbf16> -> vector<16x17x128xbf16>
    %6 = vector.extract_strided_slice %1 {offsets = [0, 0, 0], sizes = [16, 16, 128], strides = [1, 1, 1]} : vector<16x17x128xbf16> to vector<16x16x128xbf16>
    %7 = vector.shape_cast %6 : vector<16x16x128xbf16> to vector<256x128xbf16>
    %c0_7 = arith.constant 0 : index
    %c0_8 = arith.constant 0 : index
    %c0_9 = arith.constant 0 : index
    %8 = vector.load %arg4[%c0_7, %c0_8, %c0_9] : memref<4x128x256xbf16, #tpu.memory_space<vmem>>, vector<1x128x256xbf16>
    %9 = vector.shape_cast %8 : vector<1x128x256xbf16> to vector<128x256xbf16>
    %cst = arith.constant dense<0.000000e+00> : vector<256x256xf32>
    %10 = tpu.matmul %7, %9, %cst {dimension_numbers = #tpu.dot_dimension_numbers<[1], [0], [0], [1], [0, 0, 1, 1], [], []>} : vector<256x128xbf16>, vector<128x256xbf16>, vector<256x256xf32> -> vector<256x256xf32>
    %11 = vector.extract_strided_slice %1 {offsets = [0, 1, 0], sizes = [16, 16, 128], strides = [1, 1, 1]} : vector<16x17x128xbf16> to vector<16x16x128xbf16>
    %12 = vector.shape_cast %11 : vector<16x16x128xbf16> to vector<256x128xbf16>
    %c1 = arith.constant 1 : index
    %c0_10 = arith.constant 0 : index
    %c0_11 = arith.constant 0 : index
    %13 = vector.load %arg4[%c1, %c0_10, %c0_11] : memref<4x128x256xbf16, #tpu.memory_space<vmem>>, vector<1x128x256xbf16>
    %14 = vector.shape_cast %13 : vector<1x128x256xbf16> to vector<128x256xbf16>
    %cst_12 = arith.constant dense<0.000000e+00> : vector<256x256xf32>
    %15 = tpu.matmul %12, %14, %cst_12 {dimension_numbers = #tpu.dot_dimension_numbers<[1], [0], [0], [1], [0, 0, 1, 1], [], []>} : vector<256x128xbf16>, vector<128x256xbf16>, vector<256x256xf32> -> vector<256x256xf32>
    %16 = arith.addf %10, %15 : vector<256x256xf32>
    %17 = vector.extract_strided_slice %5 {offsets = [0, 0, 0], sizes = [16, 16, 128], strides = [1, 1, 1]} : vector<16x17x128xbf16> to vector<16x16x128xbf16>
    %18 = vector.shape_cast %17 : vector<16x16x128xbf16> to vector<256x128xbf16>
    %c2 = arith.constant 2 : index
    %c0_13 = arith.constant 0 : index
    %c0_14 = arith.constant 0 : index
    %19 = vector.load %arg4[%c2, %c0_13, %c0_14] : memref<4x128x256xbf16, #tpu.memory_space<vmem>>, vector<1x128x256xbf16>
    %20 = vector.shape_cast %19 : vector<1x128x256xbf16> to vector<128x256xbf16>
    %cst_15 = arith.constant dense<0.000000e+00> : vector<256x256xf32>
    %21 = tpu.matmul %18, %20, %cst_15 {dimension_numbers = #tpu.dot_dimension_numbers<[1], [0], [0], [1], [0, 0, 1, 1], [], []>} : vector<256x128xbf16>, vector<128x256xbf16>, vector<256x256xf32> -> vector<256x256xf32>
    %22 = arith.addf %16, %21 : vector<256x256xf32>
    %23 = vector.extract_strided_slice %5 {offsets = [0, 1, 0], sizes = [16, 16, 128], strides = [1, 1, 1]} : vector<16x17x128xbf16> to vector<16x16x128xbf16>
    %24 = vector.shape_cast %23 : vector<16x16x128xbf16> to vector<256x128xbf16>
    %c3 = arith.constant 3 : index
    %c0_16 = arith.constant 0 : index
    %c0_17 = arith.constant 0 : index
    %25 = vector.load %arg4[%c3, %c0_16, %c0_17] : memref<4x128x256xbf16, #tpu.memory_space<vmem>>, vector<1x128x256xbf16>
    %26 = vector.shape_cast %25 : vector<1x128x256xbf16> to vector<128x256xbf16>
    %cst_18 = arith.constant dense<0.000000e+00> : vector<256x256xf32>
    %27 = tpu.matmul %24, %26, %cst_18 {dimension_numbers = #tpu.dot_dimension_numbers<[1], [0], [0], [1], [0, 0, 1, 1], [], []>} : vector<256x128xbf16>, vector<128x256xbf16>, vector<256x256xf32> -> vector<256x256xf32>
    %28 = arith.addf %22, %27 : vector<256x256xf32>
    %c0_19 = arith.constant 0 : index
    %c0_20 = arith.constant 0 : index
    %29 = vector.load %arg5[%c0_19, %c0_20] : memref<1x256xf32, #tpu.memory_space<vmem>>, vector<1x256xf32>
    %30 = vector.broadcast %29 : vector<1x256xf32> to vector<256x256xf32>
    %31 = arith.mulf %28, %30 : vector<256x256xf32>
    %c0_21 = arith.constant 0 : index
    %c0_22 = arith.constant 0 : index
    %32 = vector.load %arg6[%c0_21, %c0_22] : memref<1x256xf32, #tpu.memory_space<vmem>>, vector<1x256xf32>
    %33 = vector.broadcast %32 : vector<1x256xf32> to vector<256x256xf32>
    %34 = arith.addf %31, %33 : vector<256x256xf32>
    %cst_23 = arith.constant 0.000000e+00 : f32
    %35 = vector.broadcast %cst_23 : f32 to vector<256x256xf32>
    %36 = arith.maximumf %34, %35 : vector<256x256xf32>
    %37 = vector.shape_cast %36 : vector<256x256xf32> to vector<16x16x256xf32>
    %38 = vector.extract_strided_slice %37 {offsets = [0, 0, 0], sizes = [16, 16, 128], strides = [1, 1, 1]} : vector<16x16x256xf32> to vector<16x16x128xf32>
    %39 = vector.extract_strided_slice %37 {offsets = [0, 0, 128], sizes = [16, 16, 128], strides = [1, 1, 1]} : vector<16x16x256xf32> to vector<16x16x128xf32>
    %40 = vector.shape_cast %38 : vector<16x16x128xf32> to vector<16x1x16x128xf32>
    %41 = vector.shape_cast %39 : vector<16x16x128xf32> to vector<16x1x16x128xf32>
    %42 = tpu.concatenate %40, %41 in 1 : vector<16x1x16x128xf32>, vector<16x1x16x128xf32> -> vector<16x2x16x128xf32>
    %43 = arith.truncf %42 : vector<16x2x16x128xf32> to vector<16x2x16x128xbf16>
    %c0_24 = arith.constant 0 : index
    %c0_25 = arith.constant 0 : index
    %c0_26 = arith.constant 0 : index
    %c0_27 = arith.constant 0 : index
    %c0_28 = arith.constant 0 : index
    %44 = vector.load %arg7[%c0_24, %c0_25, %c0_26, %c0_27, %c0_28] : memref<1x16x2x16x128xbf16, #tpu.memory_space<vmem>>, vector<1x16x2x16x128xbf16>
    %45 = vector.shape_cast %44 : vector<1x16x2x16x128xbf16> to vector<16x2x16x128xbf16>
    %46 = vector.shape_cast %43 : vector<16x2x16x128xbf16> to vector<1x16x2x16x128xbf16>
    tpu.vector_store %arg7[%c0_24, %c0_25, %c0_26, %c0_27, %c0_28], %46 {strides = array<i32>} : memref<1x16x2x16x128xbf16, #tpu.memory_space<vmem>>, vector<1x16x2x16x128xbf16>,
    return
  }
  func.func @transform_0(%arg0: i32, %arg1: i32) -> (i32, i32, i32, i32) {
    %c0_i32 = arith.constant 0 : i32
    %c0_i32_0 = arith.constant 0 : i32
    %c0_i32_1 = arith.constant 0 : i32
    return %arg0, %arg1, %c0_i32, %c0_i32_0 : i32, i32, i32, i32
  }
  func.func @transform_1(%arg0: i32, %arg1: i32) -> (i32, i32, i32, i32) {
    %c1_i32 = arith.constant 1 : i32
    %0 = arith.addi %arg1, %c1_i32 : i32
    %c16_i32 = arith.constant 16 : i32
    %1 = arith.muli %0, %c16_i32 : i32
    %c0_i32 = arith.constant 0 : i32
    %c0_i32_0 = arith.constant 0 : i32
    %c0_i32_1 = arith.constant 0 : i32
    return %arg0, %1, %c0_i32, %c0_i32_0 : i32, i32, i32, i32
  }
  func.func @transform_2(%arg0: i32, %arg1: i32) -> (i32, i32, i32) {
    %c0_i32 = arith.constant 0 : i32
    %c0_i32_0 = arith.constant 0 : i32
    %c0_i32_1 = arith.constant 0 : i32
    %c0_i32_2 = arith.constant 0 : i32
    return %c0_i32, %c0_i32_0, %c0_i32_1 : i32, i32, i32
  }
  func.func @transform_3(%arg0: i32, %arg1: i32) -> (i32, i32) {
    %c0_i32 = arith.constant 0 : i32
    %c0_i32_0 = arith.constant 0 : i32
    %c0_i32_1 = arith.constant 0 : i32
    return %c0_i32, %c0_i32_0 : i32, i32
  }
  func.func @transform_4(%arg0: i32, %arg1: i32) -> (i32, i32) {
    %c0_i32 = arith.constant 0 : i32
    %c0_i32_0 = arith.constant 0 : i32
    %c0_i32_1 = arith.constant 0 : i32
    return %c0_i32, %c0_i32_0 : i32, i32
  }
  func.func @transform_5(%arg0: i32, %arg1: i32) -> (i32, i32, i32, i32, i32) {
    %c0_i32 = arith.constant 0 : i32
    %c0_i32_0 = arith.constant 0 : i32
    %c0_i32_1 = arith.constant 0 : i32
    %c0_i32_2 = arith.constant 0 : i32
    return %arg0, %arg1, %c0_i32, %c0_i32_0, %c0_i32_1 : i32, i32, i32, i32, i32
  }
}

</mosaic_0001>

<llo_original>
// kernel: tile.13
$region0: #{tile.13}
  #allocation0 [shape = 's32[1]{0}', space=sflag, size = 0x4, scoped, tag = 'scoped memory for tile.13']
  %s0 = inlined_call_operand.vmem [shape: f32[64], index: 0, kind: input, shape index: {}]
  %s1 = inlined_call_operand.vmem [shape: f32[4,64], index: 1, kind: output, shape index: {}]
  // Predicated region
  $region2: #{tile.13} parent=0 // pred_check
    _
  $region3: #{tile.13} parent=0 // pred_check_branch
    %3 = sbr.rel (0) target = $region5
  $region4: #{tile.13} parent=0 // pred_region
    _
  $region5: #{tile.13} parent=0 // pred_fallthru
    _
  %v4 = vld [vmem:[%s0] ss:$0 sm:$0xff]
  %5 = vst [vmem:[%s1] sm:$0xf] %v4

// kernel: tile.14
$region0: #{tile.14}
  %s0 = inlined_call_operand.vmem [shape: f32[4,64], index: 0, kind: input, shape index: {}]
  %s1 = inlined_call_operand.vmem [shape: f32[1,256], index: 1, kind: output, shape index: {}]
  $region1: #{tile.14} parent=0
    #allocation0 [shape = 'u8[8192]{0}', space=vmem, size = 0x2000, scoped, tag = 'scoped mem for output reshape']
    #allocation1 [shape = 'u8[4096]{0}', space=vmem, size = 0x1000, scoped, tag = 'scoped mem for input reshape']
    %s3 = sshllo.u32 0, 4
    %v4 = vld [vmem:[%s0] sm:%s3]
    %5 = vst [vmem:[#allocation1] sm:%s3] %v4
    %s6 = smov 3
    %v7 = vld [vmem:[#allocation1] ss:$2 sm:%s6]
    %vm8 = vcmask 523264
    %9 = vst.msk [vmem:[#allocation0] ss:$8 sm:$0x3] %vm8, %v7
    %s10 = scalar_lea.vmem [#allocation1], 1
    %s11 = smov 3
    %v12 = vld [vmem:[%s10] ss:$2 sm:%s11]
    %13 = vrot.lane.b32.xlu0 %v12, 64
    %v14 = vpop.permute.xlu0 %13
    %vm15 = vcmask 1048064
    %16 = vst.msk [vmem:[#allocation0] ss:$8 sm:$0x3] %vm15, %v14
    %s18 = sshllo.u32 0, 1
    %v20 = vld [vmem:[#allocation0] sm:%s18]
    %s21 = sshllo.u32 0, 1
    %22 = vst [vmem:[%s1] sm:%s21] %v20
    %s23 = scalar_lea.vmem [#allocation0], 8
    %v24 = vld [vmem:[%s23] sm:%s18]
    %s25 = sshllo.u32 0, 1
    %s26 = scalar_lea.vmem %s1, 1
    %27 = vst [vmem:[%s26] sm:%s25] %v24

// kernel: upsampler_block_forward.1
$region0: #{upsampler_block_forward.1}
  #allocation0 [shape = 'u32[]', space=smem, size = 0x4, offset = 0x4, fixed_abs, tag = 'smem constant byte address 0x4 - core index']
  #allocation1 [shape = 'u32[144,128]{1,0:T(1,128)}', space=vmem, size = 0x12000, scoped, tag = 'internal scratch']
  %s0 = inlined_call_operand.vmem [shape: bf16[2,17,17,128], index: 0, kind: input, shape index: {}, may-alias: {0,1}]
  %s1 = inlined_call_operand.vmem [shape: bf16[2,17,17,128], index: 1, kind: input, shape index: {}, may-alias: {0,1}]
  %s2 = inlined_call_operand.vmem [shape: bf16[4,128,256], index: 2, kind: input, shape index: {}]
  %s3 = inlined_call_operand.vmem [shape: f32[1,256], index: 3, kind: input, shape index: {}]
  %s4 = inlined_call_operand.vmem [shape: f32[1,256], index: 4, kind: input, shape index: {}]
  %s5 = inlined_call_operand.vmem [shape: bf16[2,16,2,16,128], index: 5, kind: output, shape index: {}]
  %s6 = sld [smem:[#allocation0]]
  $region53: #{upsampler_block_forward.1} parent=0
    _
  %s8 = ssub.s32 1, %s6
  %s9 = scalar_select 0, %s8, %s6
  loop: start=0, step=1, limit=4
  $region2: #{upsampler_block_forward.1} parent=0 // loop_pre_header
    _
  $region3: #{upsampler_block_forward.1} parent=0 // loop_header
    %s11 = sphi 0, %s15
    %p12 = scmp.ge.s32.totalorder %s11, 4
    %s18 = sphi 0, %s30
    %s19 = sphi 0, %s26
    %s20 = sphi 0, %s18
    %s21 = sphi 0, %s19
    %s22 = sphi 0, %s20
    %s23 = sphi 0, %s21
    %s35 = sphi 0, %s37
    %s38 = sphi 0, %s35
    %s39 = sphi 0, %s38
    %s55 = sphi 0, %s39
    %s67 = sphi 0, %s69
    %s70 = sphi 0, %s67
    %s71 = sphi 0, %s70
    %s87 = sphi 0, %s71
    %s91 = sphi 0, %s91
    %s93 = sphi 0, %s91
    %s94 = sphi 0, %s93
    %s108 = sphi 0, %s94
    %s112 = sphi 0, %s112
    %s114 = sphi 0, %s112
    %s115 = sphi 0, %s114
    %s129 = sphi 0, %s115
    %s133 = sphi 0, %s133
    %s135 = sphi 0, %s133
    %s136 = sphi 0, %s135
    %s150 = sphi 0, %s136
    %s158 = sphi 0, %s160
    %s161 = sphi 0, %s158
    %s162 = sphi 0, %s161
    %s178 = sphi 0, %s162
  $region4: #{upsampler_block_forward.1} parent=0 // loop_header_branch
    %14 = sbr.rel (%p12) target = $region8
  $region5: #{upsampler_block_forward.1} parent=0 // loop_body
    %s16 = ssub.s32 %s11, 1
    %s17 = ssub.s32 %s11, 2
    %s24 = sadd.s32 1, %s19
    %p25 = scmp.ge.s32.totalorder %s24, 1
    %s26 = scalar_select %p25, 0, %s24
    %s27 = sadd.s32 1, %s18
    %s28 = scalar_select %p25, %s27, %s18
    %p29 = scmp.ge.s32.totalorder %s28, 2
    %s30 = scalar_select %p29, 0, %s28
    %s31 = ssub.s32 %s18, %s30
    %s32 = ssub.s32 %s19, %s26
    %s33 = sor.u32 %s31, %s32
    %p34 = scmp.eq.s32.totalorder %s33, 0
    %s36 = sadd.s32 %s35, 1
    %s37 = scalar_select %p34, %s35, %s36
    %p40 = pneg %p34
    %p41 = scmp.eq.s32.totalorder %s11, 1
    %p42 = por %p40, %p41
    %p43 = scmp.ne.s32.totalorder %s35, %s38
    %p44 = scmp.eq.s32.totalorder %s11, 0
    %p45 = por %p43, %p44
    %p46 = scmp.ne.s32.totalorder %s35, %s38
    %p47 = scmp.eq.s32.totalorder %s16, 1
    %p48 = por %p46, %p47
    %p49 = scmp.ne.s32.totalorder %s38, %s39
    %p50 = scmp.eq.s32.totalorder %s16, 0
    %p51 = por %p49, %p50
    %p52 = scmp.ne.s32.totalorder %s38, %s39
    %p53 = scmp.eq.s32.totalorder %s17, 1
    %p54 = por %p52, %p53
    %p56 = scmp.ne.s32.totalorder %s39, %s55
    %p57 = scmp.eq.s32.totalorder %s17, 0
    %p58 = por %p56, %p57
    %s59 = sadd.s32 %s19, 1
    %s60 = smul.u32 %s59, 16
    %s61 = sadd.s32 %s26, 1
    %s62 = smul.u32 %s61, 16
    %s63 = ssub.s32 %s18, %s30
    %s64 = ssub.s32 %s60, %s62
    %s65 = sor.u32 %s63, %s64
    %p66 = scmp.eq.s32.totalorder %s65, 0
    %s68 = sadd.s32 %s67, 1
    %s69 = scalar_select %p66, %s67, %s68
    %p72 = pneg %p66
    %p73 = scmp.eq.s32.totalorder %s11, 1
    %p74 = por %p72, %p73
    %p75 = scmp.ne.s32.totalorder %s67, %s70
    %p76 = scmp.eq.s32.totalorder %s11, 0
    %p77 = por %p75, %p76
    %p78 = scmp.ne.s32.totalorder %s67, %s70
    %p79 = scmp.eq.s32.totalorder %s16, 1
    %p80 = por %p78, %p79
    %p81 = scmp.ne.s32.totalorder %s70, %s71
    %p82 = scmp.eq.s32.totalorder %s16, 0
    %p83 = por %p81, %p82
    %p84 = scmp.ne.s32.totalorder %s70, %s71
    %p85 = scmp.eq.s32.totalorder %s17, 1
    %p86 = por %p84, %p85
    %p88 = scmp.ne.s32.totalorder %s71, %s87
    %p89 = scmp.eq.s32.totalorder %s17, 0
    %p90 = por %p88, %p89
    %s92 = sadd.s32 %s91, 1
    %p95 = scmp.eq.s32.totalorder %s11, 1
    %p96 = scmp.ne.s32.totalorder %s91, %s93
    %p97 = scmp.eq.s32.totalorder %s11, 0
    %p98 = por %p96, %p97
    %p99 = scmp.ne.s32.totalorder %s91, %s93
    %p100 = scmp.eq.s32.totalorder %s16, 1
    %p101 = por %p99, %p100
    %p102 = scmp.ne.s32.totalorder %s93, %s94
    %p103 = scmp.eq.s32.totalorder %s16, 0
    %p104 = por %p102, %p103
    %p105 = scmp.ne.s32.totalorder %s93, %s94
    %p106 = scmp.eq.s32.totalorder %s17, 1
    %p107 = por %p105, %p106
    %p109 = scmp.ne.s32.totalorder %s94, %s108
    %p110 = scmp.eq.s32.totalorder %s17, 0
    %p111 = por %p109, %p110
    %s113 = sadd.s32 %s112, 1
    %p116 = scmp.eq.s32.totalorder %s11, 1
    %p117 = scmp.ne.s32.totalorder %s112, %s114
    %p118 = scmp.eq.s32.totalorder %s11, 0
    %p119 = por %p117, %p118
    %p120 = scmp.ne.s32.totalorder %s112, %s114
    %p121 = scmp.eq.s32.totalorder %s16, 1
    %p122 = por %p120, %p121
    %p123 = scmp.ne.s32.totalorder %s114, %s115
    %p124 = scmp.eq.s32.totalorder %s16, 0
    %p125 = por %p123, %p124
    %p126 = scmp.ne.s32.totalorder %s114, %s115
    %p127 = scmp.eq.s32.totalorder %s17, 1
    %p128 = por %p126, %p127
    %p130 = scmp.ne.s32.totalorder %s115, %s129
    %p131 = scmp.eq.s32.totalorder %s17, 0
    %p132 = por %p130, %p131
    %s134 = sadd.s32 %s133, 1
    %p137 = scmp.eq.s32.totalorder %s11, 1
    %p138 = scmp.ne.s32.totalorder %s133, %s135
    %p139 = scmp.eq.s32.totalorder %s11, 0
    %p140 = por %p138, %p139
    %p141 = scmp.ne.s32.totalorder %s133, %s135
    %p142 = scmp.eq.s32.totalorder %s16, 1
    %p143 = por %p141, %p142
    %p144 = scmp.ne.s32.totalorder %s135, %s136
    %p145 = scmp.eq.s32.totalorder %s16, 0
    %p146 = por %p144, %p145
    %p147 = scmp.ne.s32.totalorder %s135, %s136
    %p148 = scmp.eq.s32.totalorder %s17, 1
    %p149 = por %p147, %p148
    %p151 = scmp.ne.s32.totalorder %s136, %s150
    %p152 = scmp.eq.s32.totalorder %s17, 0
    %p153 = por %p151, %p152
    %s154 = ssub.s32 %s18, %s30
    %s155 = ssub.s32 %s19, %s26
    %s156 = sor.u32 %s154, %s155
    %p157 = scmp.eq.s32.totalorder %s156, 0
    %s159 = sadd.s32 %s158, 1
    %s160 = scalar_select %p157, %s158, %s159
    %p163 = pneg %p157
    %p164 = scmp.eq.s32.totalorder %s11, 1
    %p165 = por %p163, %p164
    %p166 = scmp.ne.s32.totalorder %s158, %s161
    %p167 = scmp.eq.s32.totalorder %s11, 0
    %p168 = por %p166, %p167
    %p169 = scmp.ne.s32.totalorder %s158, %s161
    %p170 = scmp.eq.s32.totalorder %s16, 1
    %p171 = por %p169, %p170
    %p172 = scmp.ne.s32.totalorder %s161, %s162
    %p173 = scmp.eq.s32.totalorder %s16, 0
    %p174 = por %p172, %p173
    %p175 = scmp.ne.s32.totalorder %s161, %s162
    %p176 = scmp.eq.s32.totalorder %s17, 1
    %p177 = por %p175, %p176
    %p179 = scmp.ne.s32.totalorder %s162, %s178
    %p180 = scmp.eq.s32.totalorder %s17, 0
    %p181 = por %p179, %p180
    %p182 = scmp.le.s32.totalorder 1, %s11
    %p183 = scmp.lt.s32.totalorder %s11, 3
    %p184 = pnand %p182, %p183
    %p185 = pneg %p184
    // Predicated region
    $region9: #{upsampler_block_forward.1} parent=5 // pred_check
      _
    $region10: #{upsampler_block_forward.1} parent=5 // pred_check_branch
      %187 = sbr.rel (%p184) target = $region12
    $region11: #{upsampler_block_forward.1} parent=5 // pred_region
      %s188 = ssub.s32 %s11, 1
      // Predicated region
      $region13: #{upsampler_block_forward.1} parent=11 // pred_check
        %p189 = pneg %p104
      $region14: #{upsampler_block_forward.1} parent=11 // pred_check_branch
        %191 = sbr.rel (%p189) target = $region16
      $region15: #{upsampler_block_forward.1} parent=11 // pred_region
        _
      $region16: #{upsampler_block_forward.1} parent=11 // pred_fallthru
        _
      // Predicated region
      $region17: #{upsampler_block_forward.1} parent=11 // pred_check
        %p192 = pneg %p125
      $region18: #{upsampler_block_forward.1} parent=11 // pred_check_branch
        %194 = sbr.rel (%p192) target = $region20
      $region19: #{upsampler_block_forward.1} parent=11 // pred_region
        _
      $region20: #{upsampler_block_forward.1} parent=11 // pred_fallthru
        _
      // Predicated region
      $region21: #{upsampler_block_forward.1} parent=11 // pred_check
        %p195 = pneg %p146
      $region22: #{upsampler_block_forward.1} parent=11 // pred_check_branch
        %197 = sbr.rel (%p195) target = $region24
      $region23: #{upsampler_block_forward.1} parent=11 // pred_region
        _
      $region24: #{upsampler_block_forward.1} parent=11 // pred_fallthru
        _
    $region12: #{upsampler_block_forward.1} parent=5 // pred_fallthru
      _
    %p198 = scmp.lt.s32.totalorder %s11, 2
    // Predicated region
    $region25: #{upsampler_block_forward.1} parent=5 // pred_check
      %p199 = pneg %p198
    $region26: #{upsampler_block_forward.1} parent=5 // pred_check_branch
      %201 = sbr.rel (%p199) target = $region28
    $region27: #{upsampler_block_forward.1} parent=5 // pred_region
      // Predicated region
      $region29: #{upsampler_block_forward.1} parent=27 // pred_check
        %p202 = pneg %p45
      $region30: #{upsampler_block_forward.1} parent=27 // pred_check_branch
        %204 = sbr.rel (%p202) target = $region32
      $region31: #{upsampler_block_forward.1} parent=27 // pred_region
        %s205 = smul.u32 16, %s19
        %s206 = ssub.s32 17, %s205
        %p207 = scmp.lt.s32.totalorder %s206, 16
        %s208 = scalar_select %p207, %s206, 16
        %s209 = smul.u32 64, %s208
        %s210 = smul.u32 %s209, 3
        %p211 = scmp.lt.s32.totalorder %s18, 1
        %s212 = scalar_select %p211, %s18, 1
        %p213 = scmp.lt.s32.totalorder %s205, 16
        %s214 = scalar_select %p213, %s205, 16
        %s215 = smul.addr %s214, 3
        %s216 = smul.addr %s212, 51
        %s217 = sadd.s32 %s215, %s216
        %s218 = smul.addr %s217, 4
        %s219 = scalar_lea.vmem %s0, %s218
        %s220 = smul.u32 16, %s19
        %s221 = ssub.s32 17, %s220
        %p222 = scmp.lt.s32.totalorder %s221, 16
        %s223 = scalar_select %p222, %s221, 16
        %s224 = smul.u32 64, %s223
        %s225 = smul.u32 %s224, 3
      $region32: #{upsampler_block_forward.1} parent=27 // pred_fallthru
        _
      // Predicated region
      $region33: #{upsampler_block_forward.1} parent=27 // pred_check
        %p226 = pneg %p77
      $region34: #{upsampler_block_forward.1} parent=27 // pred_check_branch
        %228 = sbr.rel (%p226) target = $region36
      $region35: #{upsampler_block_forward.1} parent=27 // pred_region
        %s229 = sadd.s32 %s19, 1
        %s230 = smul.u32 %s229, 16
        %p231 = scmp.lt.s32.totalorder %s18, 1
        %s232 = scalar_select %p231, %s18, 1
        %p233 = scmp.lt.s32.totalorder %s230, 16
        %s234 = scalar_select %p233, %s230, 16
        %s235 = smul.addr %s234, 3
        %s236 = smul.addr %s232, 51
        %s237 = sadd.s32 %s235, %s236
        %s238 = smul.addr %s237, 4
        %s239 = scalar_lea.vmem %s1, %s238
        %s240 = sadd.s32 %s19, 1
        %s241 = smul.u32 %s240, 16
      $region36: #{upsampler_block_forward.1} parent=27 // pred_fallthru
        _
    $region28: #{upsampler_block_forward.1} parent=5 // pred_fallthru
      _
    %p242 = scmp.le.s32.totalorder 1, %s11
    %p243 = scmp.lt.s32.totalorder %s11, 3
    %p244 = pnand %p242, %p243
    %p245 = pneg %p244
    // Predicated region
    $region37: #{upsampler_block_forward.1} parent=5 // pred_check
      _
    $region38: #{upsampler_block_forward.1} parent=5 // pred_check_branch
      %247 = sbr.rel (%p244) target = $region40
    $region39: #{upsampler_block_forward.1} parent=5 // pred_region
      %s248 = ssub.s32 %s11, 1
      %s249 = smul.u32 16, %s21
      %s250 = ssub.s32 17, %s249
      %p251 = scmp.lt.s32.totalorder %s250, 16
      %s252 = scalar_select %p251, %s250, 16
      %s253 = smul.u32 64, %s252
      %s254 = smul.u32 %s253, 3
      %p255 = scmp.lt.s32.totalorder %s20, 1
      %s256 = scalar_select %p255, %s20, 1
      %p257 = scmp.lt.s32.totalorder %s249, 16
      %s258 = scalar_select %p257, %s249, 16
      %s259 = smul.addr %s258, 3
      %s260 = smul.addr %s256, 51
      %s261 = sadd.s32 %s259, %s260
      %s262 = smul.addr %s261, 4
      %s263 = scalar_lea.vmem %s0, %s262
      %p264 = pneg %p51
      %p265 = pneg %p48
      %s266 = sadd.s32 %s21, 1
      %s267 = smul.u32 %s266, 16
      %p268 = scmp.lt.s32.totalorder %s20, 1
      %s269 = scalar_select %p268, %s20, 1
      %p270 = scmp.lt.s32.totalorder %s267, 16
      %s271 = scalar_select %p270, %s267, 16
      %s272 = smul.addr %s271, 3
      %s273 = smul.addr %s269, 51
      %s274 = sadd.s32 %s272, %s273
      %s275 = smul.addr %s274, 4
      %s276 = scalar_lea.vmem %s1, %s275
      %p277 = pneg %p83
      %p278 = pneg %p80
      %p279 = pneg %p104
      %p280 = pneg %p101
      %p281 = pneg %p125
      %p282 = pneg %p122
      %p283 = pneg %p146
      %p284 = pneg %p143
      %p285 = pneg %p174
      %p286 = pneg %p171
      %s287 = smul.u32 16, %s21
      %p288 = scmp.lt.s32.totalorder %s20, 1
      %s289 = scalar_select %p288, %s20, 1
      %p290 = scmp.lt.s32.totalorder %s287, 15
      %s291 = scalar_select %p290, %s287, 15
      %s292 = smul.addr %s291, 4
      %s293 = smul.addr %s289, 64
      %s294 = sadd.s32 %s292, %s293
      %s295 = smul.addr %s294, 4
      %s296 = scalar_lea.vmem %s5, %s295
      %s297 = smul.u32 16, %s21
      %s298 = ssub.s32 17, %s297
      %p299 = scmp.lt.s32.totalorder %s298, 16
      %s300 = scalar_select %p299, %s298, 16
      %s301 = smul.u32 64, %s300
      %s302 = smul.u32 %s301, 3
      %p303 = scmp.lt.s32.totalorder %s20, 1
      %s304 = scalar_select %p303, %s20, 1
      %p305 = scmp.lt.s32.totalorder %s297, 16
      %s306 = scalar_select %p305, %s297, 16
      %s307 = smul.addr %s306, 3
      %s308 = smul.addr %s304, 51
      %s309 = sadd.s32 %s307, %s308
      %s310 = smul.addr %s309, 4
      %s311 = scalar_lea.vmem %s0, %s310
      %s312 = smul.u32 16, %s21
      %s313 = ssub.s32 17, %s312
      %p314 = scmp.lt.s32.totalorder %s313, 16
      %s315 = scalar_select %p314, %s313, 16
      %s316 = smul.u32 64, %s315
      %s317 = smul.u32 %s316, 3
      %s318 = sadd.s32 %s21, 1
      %s319 = smul.u32 %s318, 16
      %p320 = scmp.lt.s32.totalorder %s20, 1
      %s321 = scalar_select %p320, %s20, 1
      %p322 = scmp.lt.s32.totalorder %s319, 16
      %s323 = scalar_select %p322, %s319, 16
      %s324 = smul.addr %s323, 3
      %s325 = smul.addr %s321, 51
      %s326 = sadd.s32 %s324, %s325
      %s327 = smul.addr %s326, 4
      %s328 = scalar_lea.vmem %s1, %s327
      %s329 = sadd.s32 %s21, 1
      %s330 = smul.u32 %s329, 16
      %s331 = smul.u32 16, %s21
      %p332 = scmp.lt.s32.totalorder %s20, 1
      %s333 = scalar_select %p332, %s20, 1
      %p334 = scmp.lt.s32.totalorder %s331, 15
      %s335 = scalar_select %p334, %s331, 15
      %s336 = smul.addr %s335, 4
      %s337 = smul.addr %s333, 64
      %s338 = sadd.s32 %s336, %s337
      %s339 = smul.addr %s338, 4
      %s340 = scalar_lea.vmem %s5, %s339
      %s341 = smul.u32 16, %s21
      %v343 = vld [vmem:[%s311] sm:$0xf]
      %v344 = vld [vmem:[%s311 + $0x4] sm:$0xf]
      %v345 = vld [vmem:[%s311 + $0x8] sm:$0x1]
      %v346 = vld [vmem:[%s311 + $0xc] sm:$0xf]
      %v347 = vld [vmem:[%s311 + $0x10] sm:$0xf]
      %v348 = vld [vmem:[%s311 + $0x14] sm:$0x1]
      %v349 = vld [vmem:[%s311 + $0x18] sm:$0xf]
      %v350 = vld [vmem:[%s311 + $0x1c] sm:$0xf]
      %v351 = vld [vmem:[%s311 + $0x20] sm:$0x1]
      %v352 = vld [vmem:[%s311 + $0x24] sm:$0xf]
      %v353 = vld [vmem:[%s311 + $0x28] sm:$0xf]
      %v354 = vld [vmem:[%s311 + $0x2c] sm:$0x1]
      %v355 = vld [vmem:[%s311 + $0x30] sm:$0xf]
      %v356 = vld [vmem:[%s311 + $0x34] sm:$0xf]
      %v357 = vld [vmem:[%s311 + $0x38] sm:$0x1]
      %v358 = vld [vmem:[%s311 + $0x3c] sm:$0xf]
      %v359 = vld [vmem:[%s311 + $0x40] sm:$0xf]
      %v360 = vld [vmem:[%s311 + $0x44] sm:$0x1]
      %v361 = vld [vmem:[%s311 + $0x48] sm:$0xf]
      %v362 = vld [vmem:[%s311 + $0x4c] sm:$0xf]
      %v363 = vld [vmem:[%s311 + $0x50] sm:$0x1]
      %v364 = vld [vmem:[%s311 + $0x54] sm:$0xf]
      %v365 = vld [vmem:[%s311 + $0x58] sm:$0xf]
      %v366 = vld [vmem:[%s311 + $0x5c] sm:$0x1]
      %v367 = vld [vmem:[%s311 + $0x60] sm:$0xf]
      %v368 = vld [vmem:[%s311 + $0x64] sm:$0xf]
      %v369 = vld [vmem:[%s311 + $0x68] sm:$0x1]
      %v370 = vld [vmem:[%s311 + $0x6c] sm:$0xf]
      %v371 = vld [vmem:[%s311 + $0x70] sm:$0xf]
      %v372 = vld [vmem:[%s311 + $0x74] sm:$0x1]
      %v373 = vld [vmem:[%s311 + $0x78] sm:$0xf]
      %v374 = vld [vmem:[%s311 + $0x7c] sm:$0xf]
      %v375 = vld [vmem:[%s311 + $0x80] sm:$0x1]
      %v376 = vld [vmem:[%s311 + $0x84] sm:$0xf]
      %v377 = vld [vmem:[%s311 + $0x88] sm:$0xf]
      %v378 = vld [vmem:[%s311 + $0x8c] sm:$0x1]
      %v379 = vld [vmem:[%s311 + $0x90] sm:$0xf]
      %v380 = vld [vmem:[%s311 + $0x94] sm:$0xf]
      %v381 = vld [vmem:[%s311 + $0x98] sm:$0x1]
      %v382 = vld [vmem:[%s311 + $0x9c] sm:$0xf]
      %v383 = vld [vmem:[%s311 + $0xa0] sm:$0xf]
      %v384 = vld [vmem:[%s311 + $0xa4] sm:$0x1]
      %v385 = vld [vmem:[%s311 + $0xa8] sm:$0xf]
      %v386 = vld [vmem:[%s311 + $0xac] sm:$0xf]
      %v387 = vld [vmem:[%s311 + $0xb0] sm:$0x1]
      %v388 = vld [vmem:[%s311 + $0xb4] sm:$0xf]
      %v389 = vld [vmem:[%s311 + $0xb8] sm:$0xf]
      %v390 = vld [vmem:[%s311 + $0xbc] sm:$0x1]
      %v391 = vld [vmem:[%s328] sm:$0xf]
      %v392 = vld [vmem:[%s328 + $0x4] sm:$0xf]
      %v393 = vld [vmem:[%s328 + $0x8] sm:$0x1]
      %v394 = vld [vmem:[%s2] sm:$0xff]
      %v395 = vld [vmem:[%s2 + $0x8] sm:$0xff]
      %v396 = vld [vmem:[%s2 + $0x10] sm:$0xff]
      %v397 = vld [vmem:[%s2 + $0x18] sm:$0xff]
      %v398 = vld [vmem:[%s2 + $0x20] sm:$0xff]
      %v399 = vld [vmem:[%s2 + $0x28] sm:$0xff]
      %v400 = vld [vmem:[%s2 + $0x30] sm:$0xff]
      %v401 = vld [vmem:[%s2 + $0x38] sm:$0xff]
      %v402 = vld [vmem:[%s2 + $0x40] sm:$0xff]
      %v403 = vld [vmem:[%s2 + $0x48] sm:$0xff]
      %v404 = vld [vmem:[%s2 + $0x50] sm:$0xff]
      %v405 = vld [vmem:[%s2 + $0x58] sm:$0xff]
      %v406 = vld [vmem:[%s2 + $0x60] sm:$0xff]
      %v407 = vld [vmem:[%s2 + $0x68] sm:$0xff]
      %v408 = vld [vmem:[%s2 + $0x70] sm:$0xff]
      %v409 = vld [vmem:[%s2 + $0x78] sm:$0xff]
      %vm410 = vsmask.f32 3328
      %vm411 = vsmask.f32 7440
      %vm412 = vmor %vm410, %vm411
      %v414 = vshrl.u32 %v343, 16
      %v416 = vrot.slane %v414, 4
      %v417 = vshll.u32 %v343, 16
      %v419 = vrot.slane %v417, 5
      %v420 = vor.u32 %v416, %v419
      %v421 = vrot.slane %v420, 4
      %v423 = vshll.u32 %v344, 16
      %v425 = vrot.slane %v423, 5
      %v426 = vsel %vm412, %v421, %v425
      %v427 = vshrl.u32 %v344, 16
      %v429 = vrot.slane %v427, 4
      %v430 = vor.u32 %v429, %v425
      %v431 = vrot.slane %v430, 4
      %v433 = vshll.u32 %v345, 16
      %v435 = vrot.slane %v433, 5
      %v436 = vsel %vm412, %v431, %v435
      %v438 = vshrl.u32 %v346, 16
      %v440 = vrot.slane %v438, 4
      %v441 = vshll.u32 %v346, 16
      %v443 = vrot.slane %v441, 5
      %v444 = vor.u32 %v440, %v443
      %v445 = vrot.slane %v444, 4
      %v447 = vshll.u32 %v347, 16
      %v449 = vrot.slane %v447, 5
      %v450 = vsel %vm412, %v445, %v449
      %v451 = vshrl.u32 %v347, 16
      %v453 = vrot.slane %v451, 4
      %v454 = vor.u32 %v453, %v449
      %v455 = vrot.slane %v454, 4
      %v457 = vshll.u32 %v348, 16
      %v459 = vrot.slane %v457, 5
      %v460 = vsel %vm412, %v455, %v459
      %v462 = vshrl.u32 %v349, 16
      %v464 = vrot.slane %v462, 4
      %v465 = vshll.u32 %v349, 16
      %v467 = vrot.slane %v465, 5
      %v468 = vor.u32 %v464, %v467
      %v469 = vrot.slane %v468, 4
      %v471 = vshll.u32 %v350, 16
      %v473 = vrot.slane %v471, 5
      %v474 = vsel %vm412, %v469, %v473
      %v475 = vshrl.u32 %v350, 16
      %v477 = vrot.slane %v475, 4
      %v478 = vor.u32 %v477, %v473
      %v479 = vrot.slane %v478, 4
      %v481 = vshll.u32 %v351, 16
      %v483 = vrot.slane %v481, 5
      %v484 = vsel %vm412, %v479, %v483
      %v486 = vshrl.u32 %v352, 16
      %v488 = vrot.slane %v486, 4
      %v489 = vshll.u32 %v352, 16
      %v491 = vrot.slane %v489, 5
      %v492 = vor.u32 %v488, %v491
      %v493 = vrot.slane %v492, 4
      %v495 = vshll.u32 %v353, 16
      %v497 = vrot.slane %v495, 5
      %v498 = vsel %vm412, %v493, %v497
      %v499 = vshrl.u32 %v353, 16
      %v501 = vrot.slane %v499, 4
      %v502 = vor.u32 %v501, %v497
      %v503 = vrot.slane %v502, 4
      %v505 = vshll.u32 %v354, 16
      %v507 = vrot.slane %v505, 5
      %v508 = vsel %vm412, %v503, %v507
      %v510 = vshrl.u32 %v355, 16
      %v512 = vrot.slane %v510, 4
      %v513 = vshll.u32 %v355, 16
      %v515 = vrot.slane %v513, 5
      %v516 = vor.u32 %v512, %v515
      %v517 = vrot.slane %v516, 4
      %v519 = vshll.u32 %v356, 16
      %v521 = vrot.slane %v519, 5
      %v522 = vsel %vm412, %v517, %v521
      %v523 = vshrl.u32 %v356, 16
      %v525 = vrot.slane %v523, 4
      %v526 = vor.u32 %v525, %v521
      %v527 = vrot.slane %v526, 4
      %v529 = vshll.u32 %v357, 16
      %v531 = vrot.slane %v529, 5
      %v532 = vsel %vm412, %v527, %v531
      %v534 = vshrl.u32 %v358, 16
      %v536 = vrot.slane %v534, 4
      %v537 = vshll.u32 %v358, 16
      %v539 = vrot.slane %v537, 5
      %v540 = vor.u32 %v536, %v539
      %v541 = vrot.slane %v540, 4
      %v543 = vshll.u32 %v359, 16
      %v545 = vrot.slane %v543, 5
      %v546 = vsel %vm412, %v541, %v545
      %v547 = vshrl.u32 %v359, 16
      %v549 = vrot.slane %v547, 4
      %v550 = vor.u32 %v549, %v545
      %v551 = vrot.slane %v550, 4
      %v553 = vshll.u32 %v360, 16
      %v555 = vrot.slane %v553, 5
      %v556 = vsel %vm412, %v551, %v555
      %v558 = vshrl.u32 %v361, 16
      %v560 = vrot.slane %v558, 4
      %v561 = vshll.u32 %v361, 16
      %v563 = vrot.slane %v561, 5
      %v564 = vor.u32 %v560, %v563
      %v565 = vrot.slane %v564, 4
      %v567 = vshll.u32 %v362, 16
      %v569 = vrot.slane %v567, 5
      %v570 = vsel %vm412, %v565, %v569
      %v571 = vshrl.u32 %v362, 16
      %v573 = vrot.slane %v571, 4
      %v574 = vor.u32 %v573, %v569
      %v575 = vrot.slane %v574, 4
      %v577 = vshll.u32 %v363, 16
      %v579 = vrot.slane %v577, 5
      %v580 = vsel %vm412, %v575, %v579
      %v582 = vshrl.u32 %v364, 16
      %v584 = vrot.slane %v582, 4
      %v585 = vshll.u32 %v364, 16
      %v587 = vrot.slane %v585, 5
      %v588 = vor.u32 %v584, %v587
      %v589 = vrot.slane %v588, 4
      %v591 = vshll.u32 %v365, 16
      %v593 = vrot.slane %v591, 5
      %v594 = vsel %vm412, %v589, %v593
      %v595 = vshrl.u32 %v365, 16
      %v597 = vrot.slane %v595, 4
      %v598 = vor.u32 %v597, %v593
      %v599 = vrot.slane %v598, 4
      %v601 = vshll.u32 %v366, 16
      %v603 = vrot.slane %v601, 5
      %v604 = vsel %vm412, %v599, %v603
      %v606 = vshrl.u32 %v367, 16
      %v608 = vrot.slane %v606, 4
      %v609 = vshll.u32 %v367, 16
      %v611 = vrot.slane %v609, 5
      %v612 = vor.u32 %v608, %v611
      %v613 = vrot.slane %v612, 4
      %v615 = vshll.u32 %v368, 16
      %v617 = vrot.slane %v615, 5
      %v618 = vsel %vm412, %v613, %v617
      %v619 = vshrl.u32 %v368, 16
      %v621 = vrot.slane %v619, 4
      %v622 = vor.u32 %v621, %v617
      %v623 = vrot.slane %v622, 4
      %v625 = vshll.u32 %v369, 16
      %v627 = vrot.slane %v625, 5
      %v628 = vsel %vm412, %v623, %v627
      %v630 = vshrl.u32 %v370, 16
      %v632 = vrot.slane %v630, 4
      %v633 = vshll.u32 %v370, 16
      %v635 = vrot.slane %v633, 5
      %v636 = vor.u32 %v632, %v635
      %v637 = vrot.slane %v636, 4
      %v639 = vshll.u32 %v371, 16
      %v641 = vrot.slane %v639, 5
      %v642 = vsel %vm412, %v637, %v641
      %v643 = vshrl.u32 %v371, 16
      %v645 = vrot.slane %v643, 4
      %v646 = vor.u32 %v645, %v641
      %v647 = vrot.slane %v646, 4
      %v649 = vshll.u32 %v372, 16
      %v651 = vrot.slane %v649, 5
      %v652 = vsel %vm412, %v647, %v651
      %v654 = vshrl.u32 %v373, 16
      %v656 = vrot.slane %v654, 4
      %v657 = vshll.u32 %v373, 16
      %v659 = vrot.slane %v657, 5
      %v660 = vor.u32 %v656, %v659
      %v661 = vrot.slane %v660, 4
      %v663 = vshll.u32 %v374, 16
      %v665 = vrot.slane %v663, 5
      %v666 = vsel %vm412, %v661, %v665
      %v667 = vshrl.u32 %v374, 16
      %v669 = vrot.slane %v667, 4
      %v670 = vor.u32 %v669, %v665
      %v671 = vrot.slane %v670, 4
      %v673 = vshll.u32 %v375, 16
      %v675 = vrot.slane %v673, 5
      %v676 = vsel %vm412, %v671, %v675
      %v678 = vshrl.u32 %v376, 16
      %v680 = vrot.slane %v678, 4
      %v681 = vshll.u32 %v376, 16
      %v683 = vrot.slane %v681, 5
      %v684 = vor.u32 %v680, %v683
      %v685 = vrot.slane %v684, 4
      %v687 = vshll.u32 %v377, 16
      %v689 = vrot.slane %v687, 5
      %v690 = vsel %vm412, %v685, %v689
      %v691 = vshrl.u32 %v377, 16
      %v693 = vrot.slane %v691, 4
      %v694 = vor.u32 %v693, %v689
      %v695 = vrot.slane %v694, 4
      %v697 = vshll.u32 %v378, 16
      %v699 = vrot.slane %v697, 5
      %v700 = vsel %vm412, %v695, %v699
      %v702 = vshrl.u32 %v379, 16
      %v704 = vrot.slane %v702, 4
      %v705 = vshll.u32 %v379, 16
      %v707 = vrot.slane %v705, 5
      %v708 = vor.u32 %v704, %v707
      %v709 = vrot.slane %v708, 4
      %v711 = vshll.u32 %v380, 16
      %v713 = vrot.slane %v711, 5
      %v714 = vsel %vm412, %v709, %v713
      %v715 = vshrl.u32 %v380, 16
      %v717 = vrot.slane %v715, 4
      %v718 = vor.u32 %v717, %v713
      %v719 = vrot.slane %v718, 4
      %v721 = vshll.u32 %v381, 16
      %v723 = vrot.slane %v721, 5
      %v724 = vsel %vm412, %v719, %v723
      %v726 = vshrl.u32 %v382, 16
      %v728 = vrot.slane %v726, 4
      %v729 = vshll.u32 %v382, 16
      %v731 = vrot.slane %v729, 5
      %v732 = vor.u32 %v728, %v731
      %v733 = vrot.slane %v732, 4
      %v735 = vshll.u32 %v383, 16
      %v737 = vrot.slane %v735, 5
      %v738 = vsel %vm412, %v733, %v737
      %v739 = vshrl.u32 %v383, 16
      %v741 = vrot.slane %v739, 4
      %v742 = vor.u32 %v741, %v737
      %v743 = vrot.slane %v742, 4
      %v745 = vshll.u32 %v384, 16
      %v747 = vrot.slane %v745, 5
      %v748 = vsel %vm412, %v743, %v747
      %v750 = vshrl.u32 %v385, 16
      %v752 = vrot.slane %v750, 4
      %v753 = vshll.u32 %v385, 16
      %v755 = vrot.slane %v753, 5
      %v756 = vor.u32 %v752, %v755
      %v757 = vrot.slane %v756, 4
      %v759 = vshll.u32 %v386, 16
      %v761 = vrot.slane %v759, 5
      %v762 = vsel %vm412, %v757, %v761
      %v763 = vshrl.u32 %v386, 16
      %v765 = vrot.slane %v763, 4
      %v766 = vor.u32 %v765, %v761
      %v767 = vrot.slane %v766, 4
      %v769 = vshll.u32 %v387, 16
      %v771 = vrot.slane %v769, 5
      %v772 = vsel %vm412, %v767, %v771
      %v774 = vshrl.u32 %v388, 16
      %v776 = vrot.slane %v774, 4
      %v777 = vshll.u32 %v388, 16
      %v779 = vrot.slane %v777, 5
      %v780 = vor.u32 %v776, %v779
      %v781 = vrot.slane %v780, 4
      %v783 = vshll.u32 %v389, 16
      %v785 = vrot.slane %v783, 5
      %v786 = vsel %vm412, %v781, %v785
      %v787 = vshrl.u32 %v389, 16
      %v789 = vrot.slane %v787, 4
      %v790 = vor.u32 %v789, %v785
      %v791 = vrot.slane %v790, 4
      %v793 = vshll.u32 %v390, 16
      %v795 = vrot.slane %v793, 5
      %v796 = vsel %vm412, %v791, %v795
      %s797 = scalar_lea.vmem %s2, 128
      %v798 = vld [vmem:[%s797] sm:$0xff]
      %v799 = vld [vmem:[%s797 + $0x8] sm:$0xff]
      %v800 = vld [vmem:[%s797 + $0x10] sm:$0xff]
      %v801 = vld [vmem:[%s797 + $0x18] sm:$0xff]
      %v802 = vld [vmem:[%s797 + $0x20] sm:$0xff]
      %v803 = vld [vmem:[%s797 + $0x28] sm:$0xff]
      %v804 = vld [vmem:[%s797 + $0x30] sm:$0xff]
      %v805 = vld [vmem:[%s797 + $0x38] sm:$0xff]
      %v806 = vld [vmem:[%s797 + $0x40] sm:$0xff]
      %v807 = vld [vmem:[%s797 + $0x48] sm:$0xff]
      %v808 = vld [vmem:[%s797 + $0x50] sm:$0xff]
      %v809 = vld [vmem:[%s797 + $0x58] sm:$0xff]
      %v810 = vld [vmem:[%s797 + $0x60] sm:$0xff]
      %v811 = vld [vmem:[%s797 + $0x68] sm:$0xff]
      %v812 = vld [vmem:[%s797 + $0x70] sm:$0xff]
      %v813 = vld [vmem:[%s797 + $0x78] sm:$0xff]
      %v814 = vunpack.c.l.b16 %v426
      %v815 = vunpack.c.l.b16 %v436
      %v816 = vunpack.c.l.b16 %v450
      %v817 = vunpack.c.l.b16 %v460
      %v818 = vunpack.c.l.b16 %v474
      %v819 = vunpack.c.l.b16 %v484
      %v820 = vunpack.c.l.b16 %v498
      %v821 = vunpack.c.l.b16 %v508
      %v822 = vunpack.c.l.b16 %v522
      %v823 = vunpack.c.l.b16 %v532
      %v824 = vunpack.c.l.b16 %v546
      %v825 = vunpack.c.l.b16 %v556
      %v826 = vunpack.c.l.b16 %v570
      %v827 = vunpack.c.l.b16 %v580
      %v828 = vunpack.c.l.b16 %v594
      %v829 = vunpack.c.l.b16 %v604
      %v830 = vunpack.c.l.b16 %v618
      %v831 = vunpack.c.l.b16 %v628
      %v832 = vunpack.c.l.b16 %v642
      %v833 = vunpack.c.l.b16 %v652
      %v834 = vunpack.c.l.b16 %v666
      %v835 = vunpack.c.l.b16 %v676
      %v836 = vunpack.c.l.b16 %v690
      %v837 = vunpack.c.l.b16 %v700
      %v838 = vunpack.c.l.b16 %v714
      %v839 = vunpack.c.l.b16 %v724
      %v840 = vunpack.c.l.b16 %v738
      %v841 = vunpack.c.l.b16 %v748
      %v842 = vunpack.c.l.b16 %v762
      %v843 = vunpack.c.l.b16 %v772
      %v844 = vunpack.c.l.b16 %v786
      %v845 = vunpack.c.l.b16 %v796
      %v846 = vpack.c.b16 %v815, %v814
      %v847 = vpack.c.b16 %v817, %v816
      %v848 = vpack.c.b16 %v819, %v818
      %v849 = vpack.c.b16 %v821, %v820
      %v850 = vpack.c.b16 %v823, %v822
      %v851 = vpack.c.b16 %v825, %v824
      %v852 = vpack.c.b16 %v827, %v826
      %v853 = vpack.c.b16 %v829, %v828
      %v854 = vpack.c.b16 %v831, %v830
      %v855 = vpack.c.b16 %v833, %v832
      %v856 = vpack.c.b16 %v835, %v834
      %v857 = vpack.c.b16 %v837, %v836
      %v858 = vpack.c.b16 %v839, %v838
      %v859 = vpack.c.b16 %v841, %v840
      %v860 = vpack.c.b16 %v843, %v842
      %v861 = vpack.c.b16 %v845, %v844
      %v894 = vunpack.c.l.b16 %v798
      %v895 = vunpack.c.h.b16 %v798
      %v896 = vunpack.c.l.b16 %v799
      %v897 = vunpack.c.h.b16 %v799
      %v898 = vunpack.c.l.b16 %v800
      %v899 = vunpack.c.h.b16 %v800
      %v900 = vunpack.c.l.b16 %v801
      %v901 = vunpack.c.h.b16 %v801
      %v902 = vunpack.c.l.b16 %v802
      %v903 = vunpack.c.h.b16 %v802
      %v904 = vunpack.c.l.b16 %v803
      %v905 = vunpack.c.h.b16 %v803
      %v906 = vunpack.c.l.b16 %v804
      %v907 = vunpack.c.h.b16 %v804
      %v908 = vunpack.c.l.b16 %v805
      %v909 = vunpack.c.h.b16 %v805
      %v910 = vunpack.c.l.b16 %v806
      %v911 = vunpack.c.h.b16 %v806
      %v912 = vunpack.c.l.b16 %v807
      %v913 = vunpack.c.h.b16 %v807
      %v914 = vunpack.c.l.b16 %v808
      %v915 = vunpack.c.h.b16 %v808
      %v916 = vunpack.c.l.b16 %v809
      %v917 = vunpack.c.h.b16 %v809
      %v918 = vunpack.c.l.b16 %v810
      %v919 = vunpack.c.h.b16 %v810
      %v920 = vunpack.c.l.b16 %v811
      %v921 = vunpack.c.h.b16 %v811
      %v922 = vunpack.c.l.b16 %v812
      %v923 = vunpack.c.h.b16 %v812
      %v924 = vunpack.c.l.b16 %v813
      %v925 = vunpack.c.h.b16 %v813
      %v926 = vpack.c.b16 %v896, %v894
      %v927 = vpack.c.b16 %v897, %v895
      %v928 = vpack.c.b16 %v900, %v898
      %v929 = vpack.c.b16 %v901, %v899
      %v930 = vpack.c.b16 %v904, %v902
      %v931 = vpack.c.b16 %v905, %v903
      %v932 = vpack.c.b16 %v908, %v906
      %v933 = vpack.c.b16 %v909, %v907
      %v934 = vpack.c.b16 %v912, %v910
      %v935 = vpack.c.b16 %v913, %v911
      %v936 = vpack.c.b16 %v916, %v914
      %v937 = vpack.c.b16 %v917, %v915
      %v938 = vpack.c.b16 %v920, %v918
      %v939 = vpack.c.b16 %v921, %v919
      %v940 = vpack.c.b16 %v924, %v922
      %v941 = vpack.c.b16 %v925, %v923
      %958 = vmatprep.subr.bf16.mxu0 %v927
      %959 = vmatpush1.bf16.msra.mxu0 %v926
      %960 = vmatprep.subr.bf16.mxu0 %v929
      %961 = vmatpush1.bf16.msra.mxu0 %v928
      %962 = vmatprep.subr.bf16.mxu0 %v931
      %963 = vmatpush1.bf16.msra.mxu0 %v930
      %964 = vmatprep.subr.bf16.mxu0 %v933
      %965 = vmatpush1.bf16.msra.mxu0 %v932
      %966 = vmatprep.subr.bf16.mxu0 %v935
      %967 = vmatpush1.bf16.msra.mxu0 %v934
      %968 = vmatprep.subr.bf16.mxu0 %v937
      %969 = vmatpush1.bf16.msra.mxu0 %v936
      %970 = vmatprep.subr.bf16.mxu0 %v939
      %971 = vmatpush1.bf16.msra.mxu0 %v938
      %972 = vmatprep.subr.bf16.mxu0 %v941
      %973 = vmatpush1.bf16.msra.mxu0 %v940
      %974 = vmatprep.subr.bf16.mxu0 0
      %975 = vmatpush1.bf16.msra.mxu0 0
      %976 = vmatprep.subr.bf16.mxu0 0
      %977 = vmatpush1.bf16.msra.mxu0 0
      %978 = vmatprep.subr.bf16.mxu0 0
      %979 = vmatpush1.bf16.msra.mxu0 0
      %980 = vmatprep.subr.bf16.mxu0 0
      %981 = vmatpush1.bf16.msra.mxu0 0
      %982 = vmatprep.subr.bf16.mxu0 0
      %983 = vmatpush1.bf16.msra.mxu0 0
      %984 = vmatprep.subr.bf16.mxu0 0
      %985 = vmatpush1.bf16.msra.mxu0 0
      %986 = vmatprep.subr.bf16.mxu0 0
      %987 = vmatpush1.bf16.msra.mxu0 0
      %988 = vmatprep.subr.bf16.mxu0 0
      %989 = vmatpush1.bf16.msra.mxu0 0
      %990 = vmatprep.mubr.bf16.mxu0 0
      %991 = vmatmul.mubr.bf16.gmra.mrb[0].mxu0 %v846
      %v992 = vpop.f32.mrb[0].mxu0
      %v993 = vadd.f32 0.0, %v992
      %v994 = vpop.f32.mrb[0].mxu0
      %v995 = vadd.f32 0.0, %v994
      %v996 = vpop.f32.mrb[0].mxu0
      %v997 = vadd.f32 0.0, %v996
      %v998 = vpop.f32.mrb[0].mxu0
      %v999 = vadd.f32 0.0, %v998
      %1000 = vmatprep.mubr.bf16.mxu0 0
      %1001 = vmatmul.mubr.bf16.gmra.mrb[0].mxu0 %v847
      %v1002 = vpop.f32.mrb[0].mxu0
      %v1003 = vadd.f32 0.0, %v1002
      %v1004 = vpop.f32.mrb[0].mxu0
      %v1005 = vadd.f32 0.0, %v1004
      %v1006 = vpop.f32.mrb[0].mxu0
      %v1007 = vadd.f32 0.0, %v1006
      %v1008 = vpop.f32.mrb[0].mxu0
      %v1009 = vadd.f32 0.0, %v1008
      %1010 = vmatprep.mubr.bf16.mxu0 0
      %1011 = vmatmul.mubr.bf16.gmra.mrb[0].mxu0 %v848
      %v1012 = vpop.f32.mrb[0].mxu0
      %v1013 = vadd.f32 0.0, %v1012
      %v1014 = vpop.f32.mrb[0].mxu0
      %v1015 = vadd.f32 0.0, %v1014
      %v1016 = vpop.f32.mrb[0].mxu0
      %v1017 = vadd.f32 0.0, %v1016
      %v1018 = vpop.f32.mrb[0].mxu0
      %v1019 = vadd.f32 0.0, %v1018
      %1020 = vmatprep.mubr.bf16.mxu0 0
      %1021 = vmatmul.mubr.bf16.gmra.mrb[0].mxu0 %v849
      %v1022 = vpop.f32.mrb[0].mxu0
      %v1023 = vadd.f32 0.0, %v1022
      %v1024 = vpop.f32.mrb[0].mxu0
      %v1025 = vadd.f32 0.0, %v1024
      %v1026 = vpop.f32.mrb[0].mxu0
      %v1027 = vadd.f32 0.0, %v1026
      %v1028 = vpop.f32.mrb[0].mxu0
      %v1029 = vadd.f32 0.0, %v1028
      %1030 = vmatprep.mubr.bf16.mxu0 0
      %1031 = vmatmul.mubr.bf16.gmra.mrb[0].mxu0 %v850
      %v1032 = vpop.f32.mrb[0].mxu0
      %v1033 = vadd.f32 0.0, %v1032
      %v1034 = vpop.f32.mrb[0].mxu0
      %v1035 = vadd.f32 0.0, %v1034
      %v1036 = vpop.f32.mrb[0].mxu0
      %v1037 = vadd.f32 0.0, %v1036
      %v1038 = vpop.f32.mrb[0].mxu0
      %v1039 = vadd.f32 0.0, %v1038
      %1040 = vmatprep.mubr.bf16.mxu0 0
      %1041 = vmatmul.mubr.bf16.gmra.mrb[0].mxu0 %v851
      %v1042 = vpop.f32.mrb[0].mxu0
      %v1043 = vadd.f32 0.0, %v1042
      %v1044 = vpop.f32.mrb[0].mxu0
      %v1045 = vadd.f32 0.0, %v1044
      %v1046 = vpop.f32.mrb[0].mxu0
      %v1047 = vadd.f32 0.0, %v1046
      %v1048 = vpop.f32.mrb[0].mxu0
      %v1049 = vadd.f32 0.0, %v1048
      %1050 = vmatprep.mubr.bf16.mxu0 0
      %1051 = vmatmul.mubr.bf16.gmra.mrb[0].mxu0 %v852
      %v1052 = vpop.f32.mrb[0].mxu0
      %v1053 = vadd.f32 0.0, %v1052
      %v1054 = vpop.f32.mrb[0].mxu0
      %v1055 = vadd.f32 0.0, %v1054
      %v1056 = vpop.f32.mrb[0].mxu0
      %v1057 = vadd.f32 0.0, %v1056
      %v1058 = vpop.f32.mrb[0].mxu0
      %v1059 = vadd.f32 0.0, %v1058
      %1060 = vmatprep.mubr.bf16.mxu0 0
      %1061 = vmatmul.mubr.bf16.gmra.mrb[0].mxu0 %v853
      %v1062 = vpop.f32.mrb[0].mxu0
      %v1063 = vadd.f32 0.0, %v1062
      %v1064 = vpop.f32.mrb[0].mxu0
      %v1065 = vadd.f32 0.0, %v1064
      %v1066 = vpop.f32.mrb[0].mxu0
      %v1067 = vadd.f32 0.0, %v1066
      %v1068 = vpop.f32.mrb[0].mxu0
      %v1069 = vadd.f32 0.0, %v1068
      %1070 = vmatprep.mubr.bf16.mxu0 0
      %1071 = vmatmul.mubr.bf16.gmra.mrb[0].mxu0 %v854
      %v1072 = vpop.f32.mrb[0].mxu0
      %v1073 = vadd.f32 0.0, %v1072
      %v1074 = vpop.f32.mrb[0].mxu0
      %v1075 = vadd.f32 0.0, %v1074
      %v1076 = vpop.f32.mrb[0].mxu0
      %v1077 = vadd.f32 0.0, %v1076
      %v1078 = vpop.f32.mrb[0].mxu0
      %v1079 = vadd.f32 0.0, %v1078
      %1080 = vmatprep.mubr.bf16.mxu0 0
      %1081 = vmatmul.mubr.bf16.gmra.mrb[0].mxu0 %v855
      %v1082 = vpop.f32.mrb[0].mxu0
      %v1083 = vadd.f32 0.0, %v1082
      %v1084 = vpop.f32.mrb[0].mxu0
      %v1085 = vadd.f32 0.0, %v1084
      %v1086 = vpop.f32.mrb[0].mxu0
      %v1087 = vadd.f32 0.0, %v1086
      %v1088 = vpop.f32.mrb[0].mxu0
      %v1089 = vadd.f32 0.0, %v1088
      %1090 = vmatprep.mubr.bf16.mxu0 0
      %1091 = vmatmul.mubr.bf16.gmra.mrb[0].mxu0 %v856
      %v1092 = vpop.f32.mrb[0].mxu0
      %v1093 = vadd.f32 0.0, %v1092
      %v1094 = vpop.f32.mrb[0].mxu0
      %v1095 = vadd.f32 0.0, %v1094
      %v1096 = vpop.f32.mrb[0].mxu0
      %v1097 = vadd.f32 0.0, %v1096
      %v1098 = vpop.f32.mrb[0].mxu0
      %v1099 = vadd.f32 0.0, %v1098
      %1100 = vmatprep.mubr.bf16.mxu0 0
      %1101 = vmatmul.mubr.bf16.gmra.mrb[0].mxu0 %v857
      %v1102 = vpop.f32.mrb[0].mxu0
      %v1103 = vadd.f32 0.0, %v1102
      %v1104 = vpop.f32.mrb[0].mxu0
      %v1105 = vadd.f32 0.0, %v1104
      %v1106 = vpop.f32.mrb[0].mxu0
      %v1107 = vadd.f32 0.0, %v1106
      %v1108 = vpop.f32.mrb[0].mxu0
      %v1109 = vadd.f32 0.0, %v1108
      %1110 = vmatprep.mubr.bf16.mxu0 0
      %1111 = vmatmul.mubr.bf16.gmra.mrb[0].mxu0 %v858
      %v1112 = vpop.f32.mrb[0].mxu0
      %v1113 = vadd.f32 0.0, %v1112
      %v1114 = vpop.f32.mrb[0].mxu0
      %v1115 = vadd.f32 0.0, %v1114
      %v1116 = vpop.f32.mrb[0].mxu0
      %v1117 = vadd.f32 0.0, %v1116
      %v1118 = vpop.f32.mrb[0].mxu0
      %v1119 = vadd.f32 0.0, %v1118
      %1120 = vmatprep.mubr.bf16.mxu0 0
      %1121 = vmatmul.mubr.bf16.gmra.mrb[0].mxu0 %v859
      %v1122 = vpop.f32.mrb[0].mxu0
      %v1123 = vadd.f32 0.0, %v1122
      %v1124 = vpop.f32.mrb[0].mxu0
      %v1125 = vadd.f32 0.0, %v1124
      %v1126 = vpop.f32.mrb[0].mxu0
      %v1127 = vadd.f32 0.0, %v1126
      %v1128 = vpop.f32.mrb[0].mxu0
      %v1129 = vadd.f32 0.0, %v1128
      %1130 = vmatprep.mubr.bf16.mxu0 0
      %1131 = vmatmul.mubr.bf16.gmra.mrb[0].mxu0 %v860
      %v1132 = vpop.f32.mrb[0].mxu0
      %v1133 = vadd.f32 0.0, %v1132
      %v1134 = vpop.f32.mrb[0].mxu0
      %v1135 = vadd.f32 0.0, %v1134
      %v1136 = vpop.f32.mrb[0].mxu0
      %v1137 = vadd.f32 0.0, %v1136
      %v1138 = vpop.f32.mrb[0].mxu0
      %v1139 = vadd.f32 0.0, %v1138
      %1140 = vmatprep.mubr.bf16.mxu0 0
      %1141 = vmatmul.mubr.bf16.gmra.mrb[0].mxu0 %v861
      %v1142 = vpop.f32.mrb[0].mxu0
      %v1143 = vadd.f32 0.0, %v1142
      %v1144 = vpop.f32.mrb[0].mxu0
      %v1145 = vadd.f32 0.0, %v1144
      %v1146 = vpop.f32.mrb[0].mxu0
      %v1147 = vadd.f32 0.0, %v1146
      %v1148 = vpop.f32.mrb[0].mxu0
      %v1149 = vadd.f32 0.0, %v1148
      %1150 = vdwg.mxu0
      %v1183 = vunpack.c.l.b16 %v343
      %v1184 = vunpack.c.l.b16 %v344
      %v1185 = vunpack.c.l.b16 %v346
      %v1186 = vunpack.c.l.b16 %v347
      %v1187 = vunpack.c.l.b16 %v349
      %v1188 = vunpack.c.l.b16 %v350
      %v1189 = vunpack.c.l.b16 %v352
      %v1190 = vunpack.c.l.b16 %v353
      %v1191 = vunpack.c.l.b16 %v355
      %v1192 = vunpack.c.l.b16 %v356
      %v1193 = vunpack.c.l.b16 %v358
      %v1194 = vunpack.c.l.b16 %v359
      %v1195 = vunpack.c.l.b16 %v361
      %v1196 = vunpack.c.l.b16 %v362
      %v1197 = vunpack.c.l.b16 %v364
      %v1198 = vunpack.c.l.b16 %v365
      %v1199 = vunpack.c.l.b16 %v367
      %v1200 = vunpack.c.l.b16 %v368
      %v1201 = vunpack.c.l.b16 %v370
      %v1202 = vunpack.c.l.b16 %v371
      %v1203 = vunpack.c.l.b16 %v373
      %v1204 = vunpack.c.l.b16 %v374
      %v1205 = vunpack.c.l.b16 %v376
      %v1206 = vunpack.c.l.b16 %v377
      %v1207 = vunpack.c.l.b16 %v379
      %v1208 = vunpack.c.l.b16 %v380
      %v1209 = vunpack.c.l.b16 %v382
      %v1210 = vunpack.c.l.b16 %v383
      %v1211 = vunpack.c.l.b16 %v385
      %v1212 = vunpack.c.l.b16 %v386
      %v1213 = vunpack.c.l.b16 %v388
      %v1214 = vunpack.c.l.b16 %v389
      %v1215 = vpack.c.b16 %v1184, %v1183
      %v1216 = vpack.c.b16 %v1186, %v1185
      %v1217 = vpack.c.b16 %v1188, %v1187
      %v1218 = vpack.c.b16 %v1190, %v1189
      %v1219 = vpack.c.b16 %v1192, %v1191
      %v1220 = vpack.c.b16 %v1194, %v1193
      %v1221 = vpack.c.b16 %v1196, %v1195
      %v1222 = vpack.c.b16 %v1198, %v1197
      %v1223 = vpack.c.b16 %v1200, %v1199
      %v1224 = vpack.c.b16 %v1202, %v1201
      %v1225 = vpack.c.b16 %v1204, %v1203
      %v1226 = vpack.c.b16 %v1206, %v1205
      %v1227 = vpack.c.b16 %v1208, %v1207
      %v1228 = vpack.c.b16 %v1210, %v1209
      %v1229 = vpack.c.b16 %v1212, %v1211
      %v1230 = vpack.c.b16 %v1214, %v1213
      %v1263 = vunpack.c.l.b16 %v394
      %v1264 = vunpack.c.h.b16 %v394
      %v1265 = vunpack.c.l.b16 %v395
      %v1266 = vunpack.c.h.b16 %v395
      %v1267 = vunpack.c.l.b16 %v396
      %v1268 = vunpack.c.h.b16 %v396
      %v1269 = vunpack.c.l.b16 %v397
      %v1270 = vunpack.c.h.b16 %v397
      %v1271 = vunpack.c.l.b16 %v398
      %v1272 = vunpack.c.h.b16 %v398
      %v1273 = vunpack.c.l.b16 %v399
      %v1274 = vunpack.c.h.b16 %v399
      %v1275 = vunpack.c.l.b16 %v400
      %v1276 = vunpack.c.h.b16 %v400
      %v1277 = vunpack.c.l.b16 %v401
      %v1278 = vunpack.c.h.b16 %v401
      %v1279 = vunpack.c.l.b16 %v402
      %v1280 = vunpack.c.h.b16 %v402
      %v1281 = vunpack.c.l.b16 %v403
      %v1282 = vunpack.c.h.b16 %v403
      %v1283 = vunpack.c.l.b16 %v404
      %v1284 = vunpack.c.h.b16 %v404
      %v1285 = vunpack.c.l.b16 %v405
      %v1286 = vunpack.c.h.b16 %v405
      %v1287 = vunpack.c.l.b16 %v406
      %v1288 = vunpack.c.h.b16 %v406
      %v1289 = vunpack.c.l.b16 %v407
      %v1290 = vunpack.c.h.b16 %v407
      %v1291 = vunpack.c.l.b16 %v408
      %v1292 = vunpack.c.h.b16 %v408
      %v1293 = vunpack.c.l.b16 %v409
      %v1294 = vunpack.c.h.b16 %v409
      %v1295 = vpack.c.b16 %v1265, %v1263
      %v1296 = vpack.c.b16 %v1266, %v1264
      %v1297 = vpack.c.b16 %v1269, %v1267
      %v1298 = vpack.c.b16 %v1270, %v1268
      %v1299 = vpack.c.b16 %v1273, %v1271
      %v1300 = vpack.c.b16 %v1274, %v1272
      %v1301 = vpack.c.b16 %v1277, %v1275
      %v1302 = vpack.c.b16 %v1278, %v1276
      %v1303 = vpack.c.b16 %v1281, %v1279
      %v1304 = vpack.c.b16 %v1282, %v1280
      %v1305 = vpack.c.b16 %v1285, %v1283
      %v1306 = vpack.c.b16 %v1286, %v1284
      %v1307 = vpack.c.b16 %v1289, %v1287
      %v1308 = vpack.c.b16 %v1290, %v1288
      %v1309 = vpack.c.b16 %v1293, %v1291
      %v1310 = vpack.c.b16 %v1294, %v1292
      %1327 = vmatprep.subr.bf16.mxu0 %v1296
      %1328 = vmatpush1.bf16.msra.mxu0 %v1295
      %1329 = vmatprep.subr.bf16.mxu0 %v1298
      %1330 = vmatpush1.bf16.msra.mxu0 %v1297
      %1331 = vmatprep.subr.bf16.mxu0 %v1300
      %1332 = vmatpush1.bf16.msra.mxu0 %v1299
      %1333 = vmatprep.subr.bf16.mxu0 %v1302
      %1334 = vmatpush1.bf16.msra.mxu0 %v1301
      %1335 = vmatprep.subr.bf16.mxu0 %v1304
      %1336 = vmatpush1.bf16.msra.mxu0 %v1303
      %1337 = vmatprep.subr.bf16.mxu0 %v1306
      %1338 = vmatpush1.bf16.msra.mxu0 %v1305
      %1339 = vmatprep.subr.bf16.mxu0 %v1308
      %1340 = vmatpush1.bf16.msra.mxu0 %v1307
      %1341 = vmatprep.subr.bf16.mxu0 %v1310
      %1342 = vmatpush1.bf16.msra.mxu0 %v1309
      %1343 = vmatprep.subr.bf16.mxu0 0
      %1344 = vmatpush1.bf16.msra.mxu0 0
      %1345 = vmatprep.subr.bf16.mxu0 0
      %1346 = vmatpush1.bf16.msra.mxu0 0
      %1347 = vmatprep.subr.bf16.mxu0 0
      %1348 = vmatpush1.bf16.msra.mxu0 0
      %1349 = vmatprep.subr.bf16.mxu0 0
      %1350 = vmatpush1.bf16.msra.mxu0 0
      %1351 = vmatprep.subr.bf16.mxu0 0
      %1352 = vmatpush1.bf16.msra.mxu0 0
      %1353 = vmatprep.subr.bf16.mxu0 0
      %1354 = vmatpush1.bf16.msra.mxu0 0
      %1355 = vmatprep.subr.bf16.mxu0 0
      %1356 = vmatpush1.bf16.msra.mxu0 0
      %1357 = vmatprep.subr.bf16.mxu0 0
      %1358 = vmatpush1.bf16.msra.mxu0 0
      %1359 = vmatprep.mubr.bf16.mxu0 0
      %1360 = vmatmul.mubr.bf16.gmra.mrb[0].mxu0 %v1215
      %v1361 = vpop.f32.mrb[0].mxu0
      %v1362 = vadd.f32 %v993, %v1361
      %v1363 = vpop.f32.mrb[0].mxu0
      %v1364 = vadd.f32 %v995, %v1363
      %v1365 = vpop.f32.mrb[0].mxu0
      %v1366 = vadd.f32 %v997, %v1365
      %v1367 = vpop.f32.mrb[0].mxu0
      %v1368 = vadd.f32 %v999, %v1367
      %1369 = vmatprep.mubr.bf16.mxu0 0
      %1370 = vmatmul.mubr.bf16.gmra.mrb[0].mxu0 %v1216
      %v1371 = vpop.f32.mrb[0].mxu0
      %v1372 = vadd.f32 %v1003, %v1371
      %v1373 = vpop.f32.mrb[0].mxu0
      %v1374 = vadd.f32 %v1005, %v1373
      %v1375 = vpop.f32.mrb[0].mxu0
      %v1376 = vadd.f32 %v1007, %v1375
      %v1377 = vpop.f32.mrb[0].mxu0
      %v1378 = vadd.f32 %v1009, %v1377
      %1379 = vmatprep.mubr.bf16.mxu0 0
      %1380 = vmatmul.mubr.bf16.gmra.mrb[0].mxu0 %v1217
      %v1381 = vpop.f32.mrb[0].mxu0
      %v1382 = vadd.f32 %v1013, %v1381
      %v1383 = vpop.f32.mrb[0].mxu0
      %v1384 = vadd.f32 %v1015, %v1383
      %v1385 = vpop.f32.mrb[0].mxu0
      %v1386 = vadd.f32 %v1017, %v1385
      %v1387 = vpop.f32.mrb[0].mxu0
      %v1388 = vadd.f32 %v1019, %v1387
      %1389 = vmatprep.mubr.bf16.mxu0 0
      %1390 = vmatmul.mubr.bf16.gmra.mrb[0].mxu0 %v1218
      %v1391 = vpop.f32.mrb[0].mxu0
      %v1392 = vadd.f32 %v1023, %v1391
      %v1393 = vpop.f32.mrb[0].mxu0
      %v1394 = vadd.f32 %v1025, %v1393
      %v1395 = vpop.f32.mrb[0].mxu0
      %v1396 = vadd.f32 %v1027, %v1395
      %v1397 = vpop.f32.mrb[0].mxu0
      %v1398 = vadd.f32 %v1029, %v1397
      %1399 = vmatprep.mubr.bf16.mxu0 0
      %1400 = vmatmul.mubr.bf16.gmra.mrb[0].mxu0 %v1219
      %v1401 = vpop.f32.mrb[0].mxu0
      %v1402 = vadd.f32 %v1033, %v1401
      %v1403 = vpop.f32.mrb[0].mxu0
      %v1404 = vadd.f32 %v1035, %v1403
      %v1405 = vpop.f32.mrb[0].mxu0
      %v1406 = vadd.f32 %v1037, %v1405
      %v1407 = vpop.f32.mrb[0].mxu0
      %v1408 = vadd.f32 %v1039, %v1407
      %1409 = vmatprep.mubr.bf16.mxu0 0
      %1410 = vmatmul.mubr.bf16.gmra.mrb[0].mxu0 %v1220
      %v1411 = vpop.f32.mrb[0].mxu0
      %v1412 = vadd.f32 %v1043, %v1411
      %v1413 = vpop.f32.mrb[0].mxu0
      %v1414 = vadd.f32 %v1045, %v1413
      %v1415 = vpop.f32.mrb[0].mxu0
      %v1416 = vadd.f32 %v1047, %v1415
      %v1417 = vpop.f32.mrb[0].mxu0
      %v1418 = vadd.f32 %v1049, %v1417
      %1419 = vmatprep.mubr.bf16.mxu0 0
      %1420 = vmatmul.mubr.bf16.gmra.mrb[0].mxu0 %v1221
      %v1421 = vpop.f32.mrb[0].mxu0
      %v1422 = vadd.f32 %v1053, %v1421
      %v1423 = vpop.f32.mrb[0].mxu0
      %v1424 = vadd.f32 %v1055, %v1423
      %v1425 = vpop.f32.mrb[0].mxu0
      %v1426 = vadd.f32 %v1057, %v1425
      %v1427 = vpop.f32.mrb[0].mxu0
      %v1428 = vadd.f32 %v1059, %v1427
      %1429 = vmatprep.mubr.bf16.mxu0 0
      %1430 = vmatmul.mubr.bf16.gmra.mrb[0].mxu0 %v1222
      %v1431 = vpop.f32.mrb[0].mxu0
      %v1432 = vadd.f32 %v1063, %v1431
      %v1433 = vpop.f32.mrb[0].mxu0
      %v1434 = vadd.f32 %v1065, %v1433
      %v1435 = vpop.f32.mrb[0].mxu0
      %v1436 = vadd.f32 %v1067, %v1435
      %v1437 = vpop.f32.mrb[0].mxu0
      %v1438 = vadd.f32 %v1069, %v1437
      %1439 = vmatprep.mubr.bf16.mxu0 0
      %1440 = vmatmul.mubr.bf16.gmra.mrb[0].mxu0 %v1223
      %v1441 = vpop.f32.mrb[0].mxu0
      %v1442 = vadd.f32 %v1073, %v1441
      %v1443 = vpop.f32.mrb[0].mxu0
      %v1444 = vadd.f32 %v1075, %v1443
      %v1445 = vpop.f32.mrb[0].mxu0
      %v1446 = vadd.f32 %v1077, %v1445
      %v1447 = vpop.f32.mrb[0].mxu0
      %v1448 = vadd.f32 %v1079, %v1447
      %1449 = vmatprep.mubr.bf16.mxu0 0
      %1450 = vmatmul.mubr.bf16.gmra.mrb[0].mxu0 %v1224
      %v1451 = vpop.f32.mrb[0].mxu0
      %v1452 = vadd.f32 %v1083, %v1451
      %v1453 = vpop.f32.mrb[0].mxu0
      %v1454 = vadd.f32 %v1085, %v1453
      %v1455 = vpop.f32.mrb[0].mxu0
      %v1456 = vadd.f32 %v1087, %v1455
      %v1457 = vpop.f32.mrb[0].mxu0
      %v1458 = vadd.f32 %v1089, %v1457
      %1459 = vmatprep.mubr.bf16.mxu0 0
      %1460 = vmatmul.mubr.bf16.gmra.mrb[0].mxu0 %v1225
      %v1461 = vpop.f32.mrb[0].mxu0
      %v1462 = vadd.f32 %v1093, %v1461
      %v1463 = vpop.f32.mrb[0].mxu0
      %v1464 = vadd.f32 %v1095, %v1463
      %v1465 = vpop.f32.mrb[0].mxu0
      %v1466 = vadd.f32 %v1097, %v1465
      %v1467 = vpop.f32.mrb[0].mxu0
      %v1468 = vadd.f32 %v1099, %v1467
      %1469 = vmatprep.mubr.bf16.mxu0 0
      %1470 = vmatmul.mubr.bf16.gmra.mrb[0].mxu0 %v1226
      %v1471 = vpop.f32.mrb[0].mxu0
      %v1472 = vadd.f32 %v1103, %v1471
      %v1473 = vpop.f32.mrb[0].mxu0
      %v1474 = vadd.f32 %v1105, %v1473
      %v1475 = vpop.f32.mrb[0].mxu0
      %v1476 = vadd.f32 %v1107, %v1475
      %v1477 = vpop.f32.mrb[0].mxu0
      %v1478 = vadd.f32 %v1109, %v1477
      %1479 = vmatprep.mubr.bf16.mxu0 0
      %1480 = vmatmul.mubr.bf16.gmra.mrb[0].mxu0 %v1227
      %v1481 = vpop.f32.mrb[0].mxu0
      %v1482 = vadd.f32 %v1113, %v1481
      %v1483 = vpop.f32.mrb[0].mxu0
      %v1484 = vadd.f32 %v1115, %v1483
      %v1485 = vpop.f32.mrb[0].mxu0
      %v1486 = vadd.f32 %v1117, %v1485
      %v1487 = vpop.f32.mrb[0].mxu0
      %v1488 = vadd.f32 %v1119, %v1487
      %1489 = vmatprep.mubr.bf16.mxu0 0
      %1490 = vmatmul.mubr.bf16.gmra.mrb[0].mxu0 %v1228
      %v1491 = vpop.f32.mrb[0].mxu0
      %v1492 = vadd.f32 %v1123, %v1491
      %v1493 = vpop.f32.mrb[0].mxu0
      %v1494 = vadd.f32 %v1125, %v1493
      %v1495 = vpop.f32.mrb[0].mxu0
      %v1496 = vadd.f32 %v1127, %v1495
      %v1497 = vpop.f32.mrb[0].mxu0
      %v1498 = vadd.f32 %v1129, %v1497
      %1499 = vmatprep.mubr.bf16.mxu0 0
      %1500 = vmatmul.mubr.bf16.gmra.mrb[0].mxu0 %v1229
      %v1501 = vpop.f32.mrb[0].mxu0
      %v1502 = vadd.f32 %v1133, %v1501
      %v1503 = vpop.f32.mrb[0].mxu0
      %v1504 = vadd.f32 %v1135, %v1503
      %v1505 = vpop.f32.mrb[0].mxu0
      %v1506 = vadd.f32 %v1137, %v1505
      %v1507 = vpop.f32.mrb[0].mxu0
      %v1508 = vadd.f32 %v1139, %v1507
      %1509 = vmatprep.mubr.bf16.mxu0 0
      %1510 = vmatmul.mubr.bf16.gmra.mrb[0].mxu0 %v1230
      %v1511 = vpop.f32.mrb[0].mxu0
      %v1512 = vadd.f32 %v1143, %v1511
      %v1513 = vpop.f32.mrb[0].mxu0
      %v1514 = vadd.f32 %v1145, %v1513
      %v1515 = vpop.f32.mrb[0].mxu0
      %v1516 = vadd.f32 %v1147, %v1515
      %v1517 = vpop.f32.mrb[0].mxu0
      %v1518 = vadd.f32 %v1149, %v1517
      %1519 = vdwg.mxu0
      %s1520 = scalar_lea.vmem %s2, 256
      %v1521 = vld [vmem:[%s1520] sm:$0xff]
      %v1522 = vld [vmem:[%s1520 + $0x8] sm:$0xff]
      %v1523 = vld [vmem:[%s1520 + $0x10] sm:$0xff]
      %v1524 = vld [vmem:[%s1520 + $0x18] sm:$0xff]
      %v1525 = vld [vmem:[%s1520 + $0x20] sm:$0xff]
      %v1526 = vld [vmem:[%s1520 + $0x28] sm:$0xff]
      %v1527 = vld [vmem:[%s1520 + $0x30] sm:$0xff]
      %v1528 = vld [vmem:[%s1520 + $0x38] sm:$0xff]
      %v1529 = vld [vmem:[%s1520 + $0x40] sm:$0xff]
      %v1530 = vld [vmem:[%s1520 + $0x48] sm:$0xff]
      %v1531 = vld [vmem:[%s1520 + $0x50] sm:$0xff]
      %v1532 = vld [vmem:[%s1520 + $0x58] sm:$0xff]
      %v1533 = vld [vmem:[%s1520 + $0x60] sm:$0xff]
      %v1534 = vld [vmem:[%s1520 + $0x68] sm:$0xff]
      %v1535 = vld [vmem:[%s1520 + $0x70] sm:$0xff]
      %v1536 = vld [vmem:[%s1520 + $0x78] sm:$0xff]
      %v1539 = vunpack.c.l.b16 %v391
      %v1540 = vunpack.c.l.b16 %v392
      %v1541 = vpack.c.b16 %v1540, %v1539
      %v1559 = vunpack.c.l.b16 %v1521
      %v1560 = vunpack.c.h.b16 %v1521
      %v1561 = vunpack.c.l.b16 %v1522
      %v1562 = vunpack.c.h.b16 %v1522
      %v1563 = vunpack.c.l.b16 %v1523
      %v1564 = vunpack.c.h.b16 %v1523
      %v1565 = vunpack.c.l.b16 %v1524
      %v1566 = vunpack.c.h.b16 %v1524
      %v1567 = vunpack.c.l.b16 %v1525
      %v1568 = vunpack.c.h.b16 %v1525
      %v1569 = vunpack.c.l.b16 %v1526
      %v1570 = vunpack.c.h.b16 %v1526
      %v1571 = vunpack.c.l.b16 %v1527
      %v1572 = vunpack.c.h.b16 %v1527
      %v1573 = vunpack.c.l.b16 %v1528
      %v1574 = vunpack.c.h.b16 %v1528
      %v1575 = vunpack.c.l.b16 %v1529
      %v1576 = vunpack.c.h.b16 %v1529
      %v1577 = vunpack.c.l.b16 %v1530
      %v1578 = vunpack.c.h.b16 %v1530
      %v1579 = vunpack.c.l.b16 %v1531
      %v1580 = vunpack.c.h.b16 %v1531
      %v1581 = vunpack.c.l.b16 %v1532
      %v1582 = vunpack.c.h.b16 %v1532
      %v1583 = vunpack.c.l.b16 %v1533
      %v1584 = vunpack.c.h.b16 %v1533
      %v1585 = vunpack.c.l.b16 %v1534
      %v1586 = vunpack.c.h.b16 %v1534
      %v1587 = vunpack.c.l.b16 %v1535
      %v1588 = vunpack.c.h.b16 %v1535
      %v1589 = vunpack.c.l.b16 %v1536
      %v1590 = vunpack.c.h.b16 %v1536
      %v1591 = vpack.c.b16 %v1561, %v1559
      %v1592 = vpack.c.b16 %v1562, %v1560
      %v1593 = vpack.c.b16 %v1565, %v1563
      %v1594 = vpack.c.b16 %v1566, %v1564
      %v1595 = vpack.c.b16 %v1569, %v1567
      %v1596 = vpack.c.b16 %v1570, %v1568
      %v1597 = vpack.c.b16 %v1573, %v1571
      %v1598 = vpack.c.b16 %v1574, %v1572
      %v1599 = vpack.c.b16 %v1577, %v1575
      %v1600 = vpack.c.b16 %v1578, %v1576
      %v1601 = vpack.c.b16 %v1581, %v1579
      %v1602 = vpack.c.b16 %v1582, %v1580
      %v1603 = vpack.c.b16 %v1585, %v1583
      %v1604 = vpack.c.b16 %v1586, %v1584
      %v1605 = vpack.c.b16 %v1589, %v1587
      %v1606 = vpack.c.b16 %v1590, %v1588
      %1623 = vmatprep.subr.bf16.mxu0 %v1592
      %1624 = vmatpush1.bf16.msra.mxu0 %v1591
      %1625 = vmatprep.subr.bf16.mxu0 %v1594
      %1626 = vmatpush1.bf16.msra.mxu0 %v1593
      %1627 = vmatprep.subr.bf16.mxu0 %v1596
      %1628 = vmatpush1.bf16.msra.mxu0 %v1595
      %1629 = vmatprep.subr.bf16.mxu0 %v1598
      %1630 = vmatpush1.bf16.msra.mxu0 %v1597
      %1631 = vmatprep.subr.bf16.mxu0 %v1600
      %1632 = vmatpush1.bf16.msra.mxu0 %v1599
      %1633 = vmatprep.subr.bf16.mxu0 %v1602
      %1634 = vmatpush1.bf16.msra.mxu0 %v1601
      %1635 = vmatprep.subr.bf16.mxu0 %v1604
      %1636 = vmatpush1.bf16.msra.mxu0 %v1603
      %1637 = vmatprep.subr.bf16.mxu0 %v1606
      %1638 = vmatpush1.bf16.msra.mxu0 %v1605
      %1639 = vmatprep.subr.bf16.mxu0 0
      %1640 = vmatpush1.bf16.msra.mxu0 0
      %1641 = vmatprep.subr.bf16.mxu0 0
      %1642 = vmatpush1.bf16.msra.mxu0 0
      %1643 = vmatprep.subr.bf16.mxu0 0
      %1644 = vmatpush1.bf16.msra.mxu0 0
      %1645 = vmatprep.subr.bf16.mxu0 0
      %1646 = vmatpush1.bf16.msra.mxu0 0
      %1647 = vmatprep.subr.bf16.mxu0 0
      %1648 = vmatpush1.bf16.msra.mxu0 0
      %1649 = vmatprep.subr.bf16.mxu0 0
      %1650 = vmatpush1.bf16.msra.mxu0 0
      %1651 = vmatprep.subr.bf16.mxu0 0
      %1652 = vmatpush1.bf16.msra.mxu0 0
      %1653 = vmatprep.subr.bf16.mxu0 0
      %1654 = vmatpush1.bf16.msra.mxu0 0
      %1655 = vmatprep.mubr.bf16.mxu0 0
      %1656 = vmatmul.mubr.bf16.gmra.mrb[0].mxu0 %v1216
      %v1657 = vpop.f32.mrb[0].mxu0
      %v1658 = vadd.f32 0.0, %v1657
      %v1659 = vpop.f32.mrb[0].mxu0
      %v1660 = vadd.f32 0.0, %v1659
      %v1661 = vpop.f32.mrb[0].mxu0
      %v1662 = vadd.f32 0.0, %v1661
      %v1663 = vpop.f32.mrb[0].mxu0
      %v1664 = vadd.f32 0.0, %v1663
      %1665 = vmatprep.mubr.bf16.mxu0 0
      %1666 = vmatmul.mubr.bf16.gmra.mrb[0].mxu0 %v1217
      %v1667 = vpop.f32.mrb[0].mxu0
      %v1668 = vadd.f32 0.0, %v1667
      %v1669 = vpop.f32.mrb[0].mxu0
      %v1670 = vadd.f32 0.0, %v1669
      %v1671 = vpop.f32.mrb[0].mxu0
      %v1672 = vadd.f32 0.0, %v1671
      %v1673 = vpop.f32.mrb[0].mxu0
      %v1674 = vadd.f32 0.0, %v1673
      %1675 = vmatprep.mubr.bf16.mxu0 0
      %1676 = vmatmul.mubr.bf16.gmra.mrb[0].mxu0 %v1218
      %v1677 = vpop.f32.mrb[0].mxu0
      %v1678 = vadd.f32 0.0, %v1677
      %v1679 = vpop.f32.mrb[0].mxu0
      %v1680 = vadd.f32 0.0, %v1679
      %v1681 = vpop.f32.mrb[0].mxu0
      %v1682 = vadd.f32 0.0, %v1681
      %v1683 = vpop.f32.mrb[0].mxu0
      %v1684 = vadd.f32 0.0, %v1683
      %1685 = vmatprep.mubr.bf16.mxu0 0
      %1686 = vmatmul.mubr.bf16.gmra.mrb[0].mxu0 %v1219
      %v1687 = vpop.f32.mrb[0].mxu0
      %v1688 = vadd.f32 0.0, %v1687
      %v1689 = vpop.f32.mrb[0].mxu0
      %v1690 = vadd.f32 0.0, %v1689
      %v1691 = vpop.f32.mrb[0].mxu0
      %v1692 = vadd.f32 0.0, %v1691
      %v1693 = vpop.f32.mrb[0].mxu0
      %v1694 = vadd.f32 0.0, %v1693
      %1695 = vmatprep.mubr.bf16.mxu0 0
      %1696 = vmatmul.mubr.bf16.gmra.mrb[0].mxu0 %v1220
      %v1697 = vpop.f32.mrb[0].mxu0
      %v1698 = vadd.f32 0.0, %v1697
      %v1699 = vpop.f32.mrb[0].mxu0
      %v1700 = vadd.f32 0.0, %v1699
      %v1701 = vpop.f32.mrb[0].mxu0
      %v1702 = vadd.f32 0.0, %v1701
      %v1703 = vpop.f32.mrb[0].mxu0
      %v1704 = vadd.f32 0.0, %v1703
      %1705 = vmatprep.mubr.bf16.mxu0 0
      %1706 = vmatmul.mubr.bf16.gmra.mrb[0].mxu0 %v1221
      %v1707 = vpop.f32.mrb[0].mxu0
      %v1708 = vadd.f32 0.0, %v1707
      %v1709 = vpop.f32.mrb[0].mxu0
      %v1710 = vadd.f32 0.0, %v1709
      %v1711 = vpop.f32.mrb[0].mxu0
      %v1712 = vadd.f32 0.0, %v1711
      %v1713 = vpop.f32.mrb[0].mxu0
      %v1714 = vadd.f32 0.0, %v1713
      %1715 = vmatprep.mubr.bf16.mxu0 0
      %1716 = vmatmul.mubr.bf16.gmra.mrb[0].mxu0 %v1222
      %v1717 = vpop.f32.mrb[0].mxu0
      %v1718 = vadd.f32 0.0, %v1717
      %v1719 = vpop.f32.mrb[0].mxu0
      %v1720 = vadd.f32 0.0, %v1719
      %v1721 = vpop.f32.mrb[0].mxu0
      %v1722 = vadd.f32 0.0, %v1721
      %v1723 = vpop.f32.mrb[0].mxu0
      %v1724 = vadd.f32 0.0, %v1723
      %1725 = vmatprep.mubr.bf16.mxu0 0
      %1726 = vmatmul.mubr.bf16.gmra.mrb[0].mxu0 %v1223
      %v1727 = vpop.f32.mrb[0].mxu0
      %v1728 = vadd.f32 0.0, %v1727
      %v1729 = vpop.f32.mrb[0].mxu0
      %v1730 = vadd.f32 0.0, %v1729
      %v1731 = vpop.f32.mrb[0].mxu0
      %v1732 = vadd.f32 0.0, %v1731
      %v1733 = vpop.f32.mrb[0].mxu0
      %v1734 = vadd.f32 0.0, %v1733
      %1735 = vmatprep.mubr.bf16.mxu0 0
      %1736 = vmatmul.mubr.bf16.gmra.mrb[0].mxu0 %v1224
      %v1737 = vpop.f32.mrb[0].mxu0
      %v1738 = vadd.f32 0.0, %v1737
      %v1739 = vpop.f32.mrb[0].mxu0
      %v1740 = vadd.f32 0.0, %v1739
      %v1741 = vpop.f32.mrb[0].mxu0
      %v1742 = vadd.f32 0.0, %v1741
      %v1743 = vpop.f32.mrb[0].mxu0
      %v1744 = vadd.f32 0.0, %v1743
      %1745 = vmatprep.mubr.bf16.mxu0 0
      %1746 = vmatmul.mubr.bf16.gmra.mrb[0].mxu0 %v1225
      %v1747 = vpop.f32.mrb[0].mxu0
      %v1748 = vadd.f32 0.0, %v1747
      %v1749 = vpop.f32.mrb[0].mxu0
      %v1750 = vadd.f32 0.0, %v1749
      %v1751 = vpop.f32.mrb[0].mxu0
      %v1752 = vadd.f32 0.0, %v1751
      %v1753 = vpop.f32.mrb[0].mxu0
      %v1754 = vadd.f32 0.0, %v1753
      %1755 = vmatprep.mubr.bf16.mxu0 0
      %1756 = vmatmul.mubr.bf16.gmra.mrb[0].mxu0 %v1226
      %v1757 = vpop.f32.mrb[0].mxu0
      %v1758 = vadd.f32 0.0, %v1757
      %v1759 = vpop.f32.mrb[0].mxu0
      %v1760 = vadd.f32 0.0, %v1759
      %v1761 = vpop.f32.mrb[0].mxu0
      %v1762 = vadd.f32 0.0, %v1761
      %v1763 = vpop.f32.mrb[0].mxu0
      %v1764 = vadd.f32 0.0, %v1763
      %1765 = vmatprep.mubr.bf16.mxu0 0
      %1766 = vmatmul.mubr.bf16.gmra.mrb[0].mxu0 %v1227
      %v1767 = vpop.f32.mrb[0].mxu0
      %v1768 = vadd.f32 0.0, %v1767
      %v1769 = vpop.f32.mrb[0].mxu0
      %v1770 = vadd.f32 0.0, %v1769
      %v1771 = vpop.f32.mrb[0].mxu0
      %v1772 = vadd.f32 0.0, %v1771
      %v1773 = vpop.f32.mrb[0].mxu0
      %v1774 = vadd.f32 0.0, %v1773
      %1775 = vmatprep.mubr.bf16.mxu0 0
      %1776 = vmatmul.mubr.bf16.gmra.mrb[0].mxu0 %v1228
      %v1777 = vpop.f32.mrb[0].mxu0
      %v1778 = vadd.f32 0.0, %v1777
      %v1779 = vpop.f32.mrb[0].mxu0
      %v1780 = vadd.f32 0.0, %v1779
      %v1781 = vpop.f32.mrb[0].mxu0
      %v1782 = vadd.f32 0.0, %v1781
      %v1783 = vpop.f32.mrb[0].mxu0
      %v1784 = vadd.f32 0.0, %v1783
      %1785 = vmatprep.mubr.bf16.mxu0 0
      %1786 = vmatmul.mubr.bf16.gmra.mrb[0].mxu0 %v1229
      %v1787 = vpop.f32.mrb[0].mxu0
      %v1788 = vadd.f32 0.0, %v1787
      %v1789 = vpop.f32.mrb[0].mxu0
      %v1790 = vadd.f32 0.0, %v1789
      %v1791 = vpop.f32.mrb[0].mxu0
      %v1792 = vadd.f32 0.0, %v1791
      %v1793 = vpop.f32.mrb[0].mxu0
      %v1794 = vadd.f32 0.0, %v1793
      %1795 = vmatprep.mubr.bf16.mxu0 0
      %1796 = vmatmul.mubr.bf16.gmra.mrb[0].mxu0 %v1230
      %v1797 = vpop.f32.mrb[0].mxu0
      %v1798 = vadd.f32 0.0, %v1797
      %v1799 = vpop.f32.mrb[0].mxu0
      %v1800 = vadd.f32 0.0, %v1799
      %v1801 = vpop.f32.mrb[0].mxu0
      %v1802 = vadd.f32 0.0, %v1801
      %v1803 = vpop.f32.mrb[0].mxu0
      %v1804 = vadd.f32 0.0, %v1803
      %1805 = vmatprep.mubr.bf16.mxu0 0
      %1806 = vmatmul.mubr.bf16.gmra.mrb[0].mxu0 %v1541
      %v1807 = vpop.f32.mrb[0].mxu0
      %v1808 = vadd.f32 0.0, %v1807
      %v1809 = vpop.f32.mrb[0].mxu0
      %v1810 = vadd.f32 0.0, %v1809
      %v1811 = vpop.f32.mrb[0].mxu0
      %v1812 = vadd.f32 0.0, %v1811
      %v1813 = vpop.f32.mrb[0].mxu0
      %v1814 = vadd.f32 0.0, %v1813
      %1815 = vdwg.mxu0
      %v1816 = vadd.f32 %v1362, %v1658
      %v1817 = vadd.f32 %v1364, %v1660
      %v1818 = vadd.f32 %v1366, %v1662
      %v1819 = vadd.f32 %v1368, %v1664
      %v1820 = vadd.f32 %v1372, %v1668
      %v1821 = vadd.f32 %v1374, %v1670
      %v1822 = vadd.f32 %v1376, %v1672
      %v1823 = vadd.f32 %v1378, %v1674
      %v1824 = vadd.f32 %v1382, %v1678
      %v1825 = vadd.f32 %v1384, %v1680
      %v1826 = vadd.f32 %v1386, %v1682
      %v1827 = vadd.f32 %v1388, %v1684
      %v1828 = vadd.f32 %v1392, %v1688
      %v1829 = vadd.f32 %v1394, %v1690
      %v1830 = vadd.f32 %v1396, %v1692
      %v1831 = vadd.f32 %v1398, %v1694
      %v1832 = vadd.f32 %v1402, %v1698
      %v1833 = vadd.f32 %v1404, %v1700
      %v1834 = vadd.f32 %v1406, %v1702
      %v1835 = vadd.f32 %v1408, %v1704
      %v1836 = vadd.f32 %v1412, %v1708
      %v1837 = vadd.f32 %v1414, %v1710
      %v1838 = vadd.f32 %v1416, %v1712
      %v1839 = vadd.f32 %v1418, %v1714
      %v1840 = vadd.f32 %v1422, %v1718
      %v1841 = vadd.f32 %v1424, %v1720
      %v1842 = vadd.f32 %v1426, %v1722
      %v1843 = vadd.f32 %v1428, %v1724
      %v1844 = vadd.f32 %v1432, %v1728
      %v1845 = vadd.f32 %v1434, %v1730
      %v1846 = vadd.f32 %v1436, %v1732
      %v1847 = vadd.f32 %v1438, %v1734
      %v1848 = vadd.f32 %v1442, %v1738
      %v1849 = vadd.f32 %v1444, %v1740
      %v1850 = vadd.f32 %v1446, %v1742
      %v1851 = vadd.f32 %v1448, %v1744
      %v1852 = vadd.f32 %v1452, %v1748
      %v1853 = vadd.f32 %v1454, %v1750
      %v1854 = vadd.f32 %v1456, %v1752
      %v1855 = vadd.f32 %v1458, %v1754
      %v1856 = vadd.f32 %v1462, %v1758
      %v1857 = vadd.f32 %v1464, %v1760
      %v1858 = vadd.f32 %v1466, %v1762
      %v1859 = vadd.f32 %v1468, %v1764
      %v1860 = vadd.f32 %v1472, %v1768
      %v1861 = vadd.f32 %v1474, %v1770
      %v1862 = vadd.f32 %v1476, %v1772
      %v1863 = vadd.f32 %v1478, %v1774
      %v1864 = vadd.f32 %v1482, %v1778
      %v1865 = vadd.f32 %v1484, %v1780
      %v1866 = vadd.f32 %v1486, %v1782
      %v1867 = vadd.f32 %v1488, %v1784
      %v1868 = vadd.f32 %v1492, %v1788
      %v1869 = vadd.f32 %v1494, %v1790
      %v1870 = vadd.f32 %v1496, %v1792
      %v1871 = vadd.f32 %v1498, %v1794
      %v1872 = vadd.f32 %v1502, %v1798
      %v1873 = vadd.f32 %v1504, %v1800
      %v1874 = vadd.f32 %v1506, %v1802
      %v1875 = vadd.f32 %v1508, %v1804
      %v1876 = vadd.f32 %v1512, %v1808
      %v1877 = vadd.f32 %v1514, %v1810
      %v1878 = vadd.f32 %v1516, %v1812
      %v1879 = vadd.f32 %v1518, %v1814
      %v1881 = vshrl.u32 %v391, 16
      %v1883 = vrot.slane %v1881, 4
      %v1884 = vshll.u32 %v391, 16
      %v1886 = vrot.slane %v1884, 5
      %v1887 = vor.u32 %v1883, %v1886
      %v1888 = vrot.slane %v1887, 4
      %v1890 = vshll.u32 %v392, 16
      %v1892 = vrot.slane %v1890, 5
      %v1893 = vsel %vm412, %v1888, %v1892
      %v1894 = vshrl.u32 %v392, 16
      %v1896 = vrot.slane %v1894, 4
      %v1897 = vor.u32 %v1896, %v1892
      %v1898 = vrot.slane %v1897, 4
      %v1900 = vshll.u32 %v393, 16
      %v1902 = vrot.slane %v1900, 5
      %v1903 = vsel %vm412, %v1898, %v1902
      %s1904 = scalar_lea.vmem %s2, 384
      %v1905 = vld [vmem:[%s1904] sm:$0xff]
      %v1906 = vld [vmem:[%s1904 + $0x8] sm:$0xff]
      %v1907 = vld [vmem:[%s1904 + $0x10] sm:$0xff]
      %v1908 = vld [vmem:[%s1904 + $0x18] sm:$0xff]
      %v1909 = vld [vmem:[%s1904 + $0x20] sm:$0xff]
      %v1910 = vld [vmem:[%s1904 + $0x28] sm:$0xff]
      %v1911 = vld [vmem:[%s1904 + $0x30] sm:$0xff]
      %v1912 = vld [vmem:[%s1904 + $0x38] sm:$0xff]
      %v1913 = vld [vmem:[%s1904 + $0x40] sm:$0xff]
      %v1914 = vld [vmem:[%s1904 + $0x48] sm:$0xff]
      %v1915 = vld [vmem:[%s1904 + $0x50] sm:$0xff]
      %v1916 = vld [vmem:[%s1904 + $0x58] sm:$0xff]
      %v1917 = vld [vmem:[%s1904 + $0x60] sm:$0xff]
      %v1918 = vld [vmem:[%s1904 + $0x68] sm:$0xff]
      %v1919 = vld [vmem:[%s1904 + $0x70] sm:$0xff]
      %v1920 = vld [vmem:[%s1904 + $0x78] sm:$0xff]
      %v1921 = vunpack.c.l.b16 %v1893
      %v1922 = vunpack.c.l.b16 %v1903
      %v1923 = vpack.c.b16 %v1922, %v1921
      %v1941 = vunpack.c.l.b16 %v1905
      %v1942 = vunpack.c.h.b16 %v1905
      %v1943 = vunpack.c.l.b16 %v1906
      %v1944 = vunpack.c.h.b16 %v1906
      %v1945 = vunpack.c.l.b16 %v1907
      %v1946 = vunpack.c.h.b16 %v1907
      %v1947 = vunpack.c.l.b16 %v1908
      %v1948 = vunpack.c.h.b16 %v1908
      %v1949 = vunpack.c.l.b16 %v1909
      %v1950 = vunpack.c.h.b16 %v1909
      %v1951 = vunpack.c.l.b16 %v1910
      %v1952 = vunpack.c.h.b16 %v1910
      %v1953 = vunpack.c.l.b16 %v1911
      %v1954 = vunpack.c.h.b16 %v1911
      %v1955 = vunpack.c.l.b16 %v1912
      %v1956 = vunpack.c.h.b16 %v1912
      %v1957 = vunpack.c.l.b16 %v1913
      %v1958 = vunpack.c.h.b16 %v1913
      %v1959 = vunpack.c.l.b16 %v1914
      %v1960 = vunpack.c.h.b16 %v1914
      %v1961 = vunpack.c.l.b16 %v1915
      %v1962 = vunpack.c.h.b16 %v1915
      %v1963 = vunpack.c.l.b16 %v1916
      %v1964 = vunpack.c.h.b16 %v1916
      %v1965 = vunpack.c.l.b16 %v1917
      %v1966 = vunpack.c.h.b16 %v1917
      %v1967 = vunpack.c.l.b16 %v1918
      %v1968 = vunpack.c.h.b16 %v1918
      %v1969 = vunpack.c.l.b16 %v1919
      %v1970 = vunpack.c.h.b16 %v1919
      %v1971 = vunpack.c.l.b16 %v1920
      %v1972 = vunpack.c.h.b16 %v1920
      %v1973 = vpack.c.b16 %v1943, %v1941
      %v1974 = vpack.c.b16 %v1944, %v1942
      %v1975 = vpack.c.b16 %v1947, %v1945
      %v1976 = vpack.c.b16 %v1948, %v1946
      %v1977 = vpack.c.b16 %v1951, %v1949
      %v1978 = vpack.c.b16 %v1952, %v1950
      %v1979 = vpack.c.b16 %v1955, %v1953
      %v1980 = vpack.c.b16 %v1956, %v1954
      %v1981 = vpack.c.b16 %v1959, %v1957
      %v1982 = vpack.c.b16 %v1960, %v1958
      %v1983 = vpack.c.b16 %v1963, %v1961
      %v1984 = vpack.c.b16 %v1964, %v1962
      %v1985 = vpack.c.b16 %v1967, %v1965
      %v1986 = vpack.c.b16 %v1968, %v1966
      %v1987 = vpack.c.b16 %v1971, %v1969
      %v1988 = vpack.c.b16 %v1972, %v1970
      %2005 = vmatprep.subr.bf16.mxu0 %v1974
      %2006 = vmatpush1.bf16.msra.mxu0 %v1973
      %2007 = vmatprep.subr.bf16.mxu0 %v1976
      %2008 = vmatpush1.bf16.msra.mxu0 %v1975
      %2009 = vmatprep.subr.bf16.mxu0 %v1978
      %2010 = vmatpush1.bf16.msra.mxu0 %v1977
      %2011 = vmatprep.subr.bf16.mxu0 %v1980
      %2012 = vmatpush1.bf16.msra.mxu0 %v1979
      %2013 = vmatprep.subr.bf16.mxu0 %v1982
      %2014 = vmatpush1.bf16.msra.mxu0 %v1981
      %2015 = vmatprep.subr.bf16.mxu0 %v1984
      %2016 = vmatpush1.bf16.msra.mxu0 %v1983
      %2017 = vmatprep.subr.bf16.mxu0 %v1986
      %2018 = vmatpush1.bf16.msra.mxu0 %v1985
      %2019 = vmatprep.subr.bf16.mxu0 %v1988
      %2020 = vmatpush1.bf16.msra.mxu0 %v1987
      %2021 = vmatprep.subr.bf16.mxu0 0
      %2022 = vmatpush1.bf16.msra.mxu0 0
      %2023 = vmatprep.subr.bf16.mxu0 0
      %2024 = vmatpush1.bf16.msra.mxu0 0
      %2025 = vmatprep.subr.bf16.mxu0 0
      %2026 = vmatpush1.bf16.msra.mxu0 0
      %2027 = vmatprep.subr.bf16.mxu0 0
      %2028 = vmatpush1.bf16.msra.mxu0 0
      %2029 = vmatprep.subr.bf16.mxu0 0
      %2030 = vmatpush1.bf16.msra.mxu0 0
      %2031 = vmatprep.subr.bf16.mxu0 0
      %2032 = vmatpush1.bf16.msra.mxu0 0
      %2033 = vmatprep.subr.bf16.mxu0 0
      %2034 = vmatpush1.bf16.msra.mxu0 0
      %2035 = vmatprep.subr.bf16.mxu0 0
      %2036 = vmatpush1.bf16.msra.mxu0 0
      %2037 = vmatprep.mubr.bf16.mxu0 0
      %2038 = vmatmul.mubr.bf16.gmra.mrb[0].mxu0 %v847
      %v2039 = vpop.f32.mrb[0].mxu0
      %v2040 = vadd.f32 0.0, %v2039
      %v2041 = vpop.f32.mrb[0].mxu0
      %v2042 = vadd.f32 0.0, %v2041
      %v2043 = vpop.f32.mrb[0].mxu0
      %v2044 = vadd.f32 0.0, %v2043
      %v2045 = vpop.f32.mrb[0].mxu0
      %v2046 = vadd.f32 0.0, %v2045
      %2047 = vmatprep.mubr.bf16.mxu0 0
      %2048 = vmatmul.mubr.bf16.gmra.mrb[0].mxu0 %v848
      %v2049 = vpop.f32.mrb[0].mxu0
      %v2050 = vadd.f32 0.0, %v2049
      %v2051 = vpop.f32.mrb[0].mxu0
      %v2052 = vadd.f32 0.0, %v2051
      %v2053 = vpop.f32.mrb[0].mxu0
      %v2054 = vadd.f32 0.0, %v2053
      %v2055 = vpop.f32.mrb[0].mxu0
      %v2056 = vadd.f32 0.0, %v2055
      %2057 = vmatprep.mubr.bf16.mxu0 0
      %2058 = vmatmul.mubr.bf16.gmra.mrb[0].mxu0 %v849
      %v2059 = vpop.f32.mrb[0].mxu0
      %v2060 = vadd.f32 0.0, %v2059
      %v2061 = vpop.f32.mrb[0].mxu0
      %v2062 = vadd.f32 0.0, %v2061
      %v2063 = vpop.f32.mrb[0].mxu0
      %v2064 = vadd.f32 0.0, %v2063
      %v2065 = vpop.f32.mrb[0].mxu0
      %v2066 = vadd.f32 0.0, %v2065
      %2067 = vmatprep.mubr.bf16.mxu0 0
      %2068 = vmatmul.mubr.bf16.gmra.mrb[0].mxu0 %v850
      %v2069 = vpop.f32.mrb[0].mxu0
      %v2070 = vadd.f32 0.0, %v2069
      %v2071 = vpop.f32.mrb[0].mxu0
      %v2072 = vadd.f32 0.0, %v2071
      %v2073 = vpop.f32.mrb[0].mxu0
      %v2074 = vadd.f32 0.0, %v2073
      %v2075 = vpop.f32.mrb[0].mxu0
      %v2076 = vadd.f32 0.0, %v2075
      %2077 = vmatprep.mubr.bf16.mxu0 0
      %2078 = vmatmul.mubr.bf16.gmra.mrb[0].mxu0 %v851
      %v2079 = vpop.f32.mrb[0].mxu0
      %v2080 = vadd.f32 0.0, %v2079
      %v2081 = vpop.f32.mrb[0].mxu0
      %v2082 = vadd.f32 0.0, %v2081
      %v2083 = vpop.f32.mrb[0].mxu0
      %v2084 = vadd.f32 0.0, %v2083
      %v2085 = vpop.f32.mrb[0].mxu0
      %v2086 = vadd.f32 0.0, %v2085
      %2087 = vmatprep.mubr.bf16.mxu0 0
      %2088 = vmatmul.mubr.bf16.gmra.mrb[0].mxu0 %v852
      %v2089 = vpop.f32.mrb[0].mxu0
      %v2090 = vadd.f32 0.0, %v2089
      %v2091 = vpop.f32.mrb[0].mxu0
      %v2092 = vadd.f32 0.0, %v2091
      %v2093 = vpop.f32.mrb[0].mxu0
      %v2094 = vadd.f32 0.0, %v2093
      %v2095 = vpop.f32.mrb[0].mxu0
      %v2096 = vadd.f32 0.0, %v2095
      %2097 = vmatprep.mubr.bf16.mxu0 0
      %2098 = vmatmul.mubr.bf16.gmra.mrb[0].mxu0 %v853
      %v2099 = vpop.f32.mrb[0].mxu0
      %v2100 = vadd.f32 0.0, %v2099
      %v2101 = vpop.f32.mrb[0].mxu0
      %v2102 = vadd.f32 0.0, %v2101
      %v2103 = vpop.f32.mrb[0].mxu0
      %v2104 = vadd.f32 0.0, %v2103
      %v2105 = vpop.f32.mrb[0].mxu0
      %v2106 = vadd.f32 0.0, %v2105
      %2107 = vmatprep.mubr.bf16.mxu0 0
      %2108 = vmatmul.mubr.bf16.gmra.mrb[0].mxu0 %v854
      %v2109 = vpop.f32.mrb[0].mxu0
      %v2110 = vadd.f32 0.0, %v2109
      %v2111 = vpop.f32.mrb[0].mxu0
      %v2112 = vadd.f32 0.0, %v2111
      %v2113 = vpop.f32.mrb[0].mxu0
      %v2114 = vadd.f32 0.0, %v2113
      %v2115 = vpop.f32.mrb[0].mxu0
      %v2116 = vadd.f32 0.0, %v2115
      %2117 = vmatprep.mubr.bf16.mxu0 0
      %2118 = vmatmul.mubr.bf16.gmra.mrb[0].mxu0 %v855
      %v2119 = vpop.f32.mrb[0].mxu0
      %v2120 = vadd.f32 0.0, %v2119
      %v2121 = vpop.f32.mrb[0].mxu0
      %v2122 = vadd.f32 0.0, %v2121
      %v2123 = vpop.f32.mrb[0].mxu0
      %v2124 = vadd.f32 0.0, %v2123
      %v2125 = vpop.f32.mrb[0].mxu0
      %v2126 = vadd.f32 0.0, %v2125
      %2127 = vmatprep.mubr.bf16.mxu0 0
      %2128 = vmatmul.mubr.bf16.gmra.mrb[0].mxu0 %v856
      %v2129 = vpop.f32.mrb[0].mxu0
      %v2130 = vadd.f32 0.0, %v2129
      %v2131 = vpop.f32.mrb[0].mxu0
      %v2132 = vadd.f32 0.0, %v2131
      %v2133 = vpop.f32.mrb[0].mxu0
      %v2134 = vadd.f32 0.0, %v2133
      %v2135 = vpop.f32.mrb[0].mxu0
      %v2136 = vadd.f32 0.0, %v2135
      %2137 = vmatprep.mubr.bf16.mxu0 0
      %2138 = vmatmul.mubr.bf16.gmra.mrb[0].mxu0 %v857
      %v2139 = vpop.f32.mrb[0].mxu0
      %v2140 = vadd.f32 0.0, %v2139
      %v2141 = vpop.f32.mrb[0].mxu0
      %v2142 = vadd.f32 0.0, %v2141
      %v2143 = vpop.f32.mrb[0].mxu0
      %v2144 = vadd.f32 0.0, %v2143
      %v2145 = vpop.f32.mrb[0].mxu0
      %v2146 = vadd.f32 0.0, %v2145
      %2147 = vmatprep.mubr.bf16.mxu0 0
      %2148 = vmatmul.mubr.bf16.gmra.mrb[0].mxu0 %v858
      %v2149 = vpop.f32.mrb[0].mxu0
      %v2150 = vadd.f32 0.0, %v2149
      %v2151 = vpop.f32.mrb[0].mxu0
      %v2152 = vadd.f32 0.0, %v2151
      %v2153 = vpop.f32.mrb[0].mxu0
      %v2154 = vadd.f32 0.0, %v2153
      %v2155 = vpop.f32.mrb[0].mxu0
      %v2156 = vadd.f32 0.0, %v2155
      %2157 = vmatprep.mubr.bf16.mxu0 0
      %2158 = vmatmul.mubr.bf16.gmra.mrb[0].mxu0 %v859
      %v2159 = vpop.f32.mrb[0].mxu0
      %v2160 = vadd.f32 0.0, %v2159
      %v2161 = vpop.f32.mrb[0].mxu0
      %v2162 = vadd.f32 0.0, %v2161
      %v2163 = vpop.f32.mrb[0].mxu0
      %v2164 = vadd.f32 0.0, %v2163
      %v2165 = vpop.f32.mrb[0].mxu0
      %v2166 = vadd.f32 0.0, %v2165
      %2167 = vmatprep.mubr.bf16.mxu0 0
      %2168 = vmatmul.mubr.bf16.gmra.mrb[0].mxu0 %v860
      %v2169 = vpop.f32.mrb[0].mxu0
      %v2170 = vadd.f32 0.0, %v2169
      %v2171 = vpop.f32.mrb[0].mxu0
      %v2172 = vadd.f32 0.0, %v2171
      %v2173 = vpop.f32.mrb[0].mxu0
      %v2174 = vadd.f32 0.0, %v2173
      %v2175 = vpop.f32.mrb[0].mxu0
      %v2176 = vadd.f32 0.0, %v2175
      %2177 = vmatprep.mubr.bf16.mxu0 0
      %2178 = vmatmul.mubr.bf16.gmra.mrb[0].mxu0 %v861
      %v2179 = vpop.f32.mrb[0].mxu0
      %v2180 = vadd.f32 0.0, %v2179
      %v2181 = vpop.f32.mrb[0].mxu0
      %v2182 = vadd.f32 0.0, %v2181
      %v2183 = vpop.f32.mrb[0].mxu0
      %v2184 = vadd.f32 0.0, %v2183
      %v2185 = vpop.f32.mrb[0].mxu0
      %v2186 = vadd.f32 0.0, %v2185
      %2187 = vmatprep.mubr.bf16.mxu0 0
      %2188 = vmatmul.mubr.bf16.gmra.mrb[0].mxu0 %v1923
      %v2189 = vpop.f32.mrb[0].mxu0
      %v2190 = vadd.f32 0.0, %v2189
      %v2191 = vpop.f32.mrb[0].mxu0
      %v2192 = vadd.f32 0.0, %v2191
      %v2193 = vpop.f32.mrb[0].mxu0
      %v2194 = vadd.f32 0.0, %v2193
      %v2195 = vpop.f32.mrb[0].mxu0
      %v2196 = vadd.f32 0.0, %v2195
      %2197 = vdwg.mxu0
      %v2198 = vadd.f32 %v1816, %v2040
      %v2199 = vadd.f32 %v1817, %v2042
      %v2200 = vadd.f32 %v1818, %v2044
      %v2201 = vadd.f32 %v1819, %v2046
      %v2202 = vadd.f32 %v1820, %v2050
      %v2203 = vadd.f32 %v1821, %v2052
      %v2204 = vadd.f32 %v1822, %v2054
      %v2205 = vadd.f32 %v1823, %v2056
      %v2206 = vadd.f32 %v1824, %v2060
      %v2207 = vadd.f32 %v1825, %v2062
      %v2208 = vadd.f32 %v1826, %v2064
      %v2209 = vadd.f32 %v1827, %v2066
      %v2210 = vadd.f32 %v1828, %v2070
      %v2211 = vadd.f32 %v1829, %v2072
      %v2212 = vadd.f32 %v1830, %v2074
      %v2213 = vadd.f32 %v1831, %v2076
      %v2214 = vadd.f32 %v1832, %v2080
      %v2215 = vadd.f32 %v1833, %v2082
      %v2216 = vadd.f32 %v1834, %v2084
      %v2217 = vadd.f32 %v1835, %v2086
      %v2218 = vadd.f32 %v1836, %v2090
      %v2219 = vadd.f32 %v1837, %v2092
      %v2220 = vadd.f32 %v1838, %v2094
      %v2221 = vadd.f32 %v1839, %v2096
      %v2222 = vadd.f32 %v1840, %v2100
      %v2223 = vadd.f32 %v1841, %v2102
      %v2224 = vadd.f32 %v1842, %v2104
      %v2225 = vadd.f32 %v1843, %v2106
      %v2226 = vadd.f32 %v1844, %v2110
      %v2227 = vadd.f32 %v1845, %v2112
      %v2228 = vadd.f32 %v1846, %v2114
      %v2229 = vadd.f32 %v1847, %v2116
      %v2230 = vadd.f32 %v1848, %v2120
      %v2231 = vadd.f32 %v1849, %v2122
      %v2232 = vadd.f32 %v1850, %v2124
      %v2233 = vadd.f32 %v1851, %v2126
      %v2234 = vadd.f32 %v1852, %v2130
      %v2235 = vadd.f32 %v1853, %v2132
      %v2236 = vadd.f32 %v1854, %v2134
      %v2237 = vadd.f32 %v1855, %v2136
      %v2238 = vadd.f32 %v1856, %v2140
      %v2239 = vadd.f32 %v1857, %v2142
      %v2240 = vadd.f32 %v1858, %v2144
      %v2241 = vadd.f32 %v1859, %v2146
      %v2242 = vadd.f32 %v1860, %v2150
      %v2243 = vadd.f32 %v1861, %v2152
      %v2244 = vadd.f32 %v1862, %v2154
      %v2245 = vadd.f32 %v1863, %v2156
      %v2246 = vadd.f32 %v1864, %v2160
      %v2247 = vadd.f32 %v1865, %v2162
      %v2248 = vadd.f32 %v1866, %v2164
      %v2249 = vadd.f32 %v1867, %v2166
      %v2250 = vadd.f32 %v1868, %v2170
      %v2251 = vadd.f32 %v1869, %v2172
      %v2252 = vadd.f32 %v1870, %v2174
      %v2253 = vadd.f32 %v1871, %v2176
      %v2254 = vadd.f32 %v1872, %v2180
      %v2255 = vadd.f32 %v1873, %v2182
      %v2256 = vadd.f32 %v1874, %v2184
      %v2257 = vadd.f32 %v1875, %v2186
      %v2258 = vadd.f32 %v1876, %v2190
      %v2259 = vadd.f32 %v1877, %v2192
      %v2260 = vadd.f32 %v1878, %v2194
      %v2261 = vadd.f32 %v1879, %v2196
      %v2262 = vld [vmem:[%s3] sm:$0x3]
      %v2264 = vlaneseq
      %v2265 = vshrl.u32 %v2264, 7
      %v2266 = vsub.s32 0, %v2265
      %v2267 = vrot.slane %v2262, %v2266
      %v2268 = vlaneseq
      %v2269 = vshrl.u32 %v2268, 7
      %v2270 = vsub.s32 1, %v2269
      %v2271 = vrot.slane %v2262, %v2270
      %v2274 = vmul.f32 %v2198, %v2267
      %v2275 = vmul.f32 %v2199, %v2271
      %v2276 = vmul.f32 %v2200, %v2267
      %v2277 = vmul.f32 %v2201, %v2271
      %v2278 = vmul.f32 %v2202, %v2267
      %v2279 = vmul.f32 %v2203, %v2271
      %v2280 = vmul.f32 %v2204, %v2267
      %v2281 = vmul.f32 %v2205, %v2271
      %v2282 = vmul.f32 %v2206, %v2267
      %v2283 = vmul.f32 %v2207, %v2271
      %v2284 = vmul.f32 %v2208, %v2267
      %v2285 = vmul.f32 %v2209, %v2271
      %v2286 = vmul.f32 %v2210, %v2267
      %v2287 = vmul.f32 %v2211, %v2271
      %v2288 = vmul.f32 %v2212, %v2267
      %v2289 = vmul.f32 %v2213, %v2271
      %v2290 = vmul.f32 %v2214, %v2267
      %v2291 = vmul.f32 %v2215, %v2271
      %v2292 = vmul.f32 %v2216, %v2267
      %v2293 = vmul.f32 %v2217, %v2271
      %v2294 = vmul.f32 %v2218, %v2267
      %v2295 = vmul.f32 %v2219, %v2271
      %v2296 = vmul.f32 %v2220, %v2267
      %v2297 = vmul.f32 %v2221, %v2271
      %v2298 = vmul.f32 %v2222, %v2267
      %v2299 = vmul.f32 %v2223, %v2271
      %v2300 = vmul.f32 %v2224, %v2267
      %v2301 = vmul.f32 %v2225, %v2271
      %v2302 = vmul.f32 %v2226, %v2267
      %v2303 = vmul.f32 %v2227, %v2271
      %v2304 = vmul.f32 %v2228, %v2267
      %v2305 = vmul.f32 %v2229, %v2271
      %v2306 = vmul.f32 %v2230, %v2267
      %v2307 = vmul.f32 %v2231, %v2271
      %v2308 = vmul.f32 %v2232, %v2267
      %v2309 = vmul.f32 %v2233, %v2271
      %v2310 = vmul.f32 %v2234, %v2267
      %v2311 = vmul.f32 %v2235, %v2271
      %v2312 = vmul.f32 %v2236, %v2267
      %v2313 = vmul.f32 %v2237, %v2271
      %v2314 = vmul.f32 %v2238, %v2267
      %v2315 = vmul.f32 %v2239, %v2271
      %v2316 = vmul.f32 %v2240, %v2267
      %v2317 = vmul.f32 %v2241, %v2271
      %v2318 = vmul.f32 %v2242, %v2267
      %v2319 = vmul.f32 %v2243, %v2271
      %v2320 = vmul.f32 %v2244, %v2267
      %v2321 = vmul.f32 %v2245, %v2271
      %v2322 = vmul.f32 %v2246, %v2267
      %v2323 = vmul.f32 %v2247, %v2271
      %v2324 = vmul.f32 %v2248, %v2267
      %v2325 = vmul.f32 %v2249, %v2271
      %v2326 = vmul.f32 %v2250, %v2267
      %v2327 = vmul.f32 %v2251, %v2271
      %v2328 = vmul.f32 %v2252, %v2267
      %v2329 = vmul.f32 %v2253, %v2271
      %v2330 = vmul.f32 %v2254, %v2267
      %v2331 = vmul.f32 %v2255, %v2271
      %v2332 = vmul.f32 %v2256, %v2267
      %v2333 = vmul.f32 %v2257, %v2271
      %v2334 = vmul.f32 %v2258, %v2267
      %v2335 = vmul.f32 %v2259, %v2271
      %v2336 = vmul.f32 %v2260, %v2267
      %v2337 = vmul.f32 %v2261, %v2271
      %v2338 = vld [vmem:[%s4] sm:$0x3]
      %v2340 = vlaneseq
      %v2341 = vshrl.u32 %v2340, 7
      %v2342 = vsub.s32 0, %v2341
      %v2343 = vrot.slane %v2338, %v2342
      %v2344 = vlaneseq
      %v2345 = vshrl.u32 %v2344, 7
      %v2346 = vsub.s32 1, %v2345
      %v2347 = vrot.slane %v2338, %v2346
      %v2350 = vadd.f32 %v2274, %v2343
      %v2351 = vadd.f32 %v2275, %v2347
      %v2352 = vadd.f32 %v2276, %v2343
      %v2353 = vadd.f32 %v2277, %v2347
      %v2354 = vadd.f32 %v2278, %v2343
      %v2355 = vadd.f32 %v2279, %v2347
      %v2356 = vadd.f32 %v2280, %v2343
      %v2357 = vadd.f32 %v2281, %v2347
      %v2358 = vadd.f32 %v2282, %v2343
      %v2359 = vadd.f32 %v2283, %v2347
      %v2360 = vadd.f32 %v2284, %v2343
      %v2361 = vadd.f32 %v2285, %v2347
      %v2362 = vadd.f32 %v2286, %v2343
      %v2363 = vadd.f32 %v2287, %v2347
      %v2364 = vadd.f32 %v2288, %v2343
      %v2365 = vadd.f32 %v2289, %v2347
      %v2366 = vadd.f32 %v2290, %v2343
      %v2367 = vadd.f32 %v2291, %v2347
      %v2368 = vadd.f32 %v2292, %v2343
      %v2369 = vadd.f32 %v2293, %v2347
      %v2370 = vadd.f32 %v2294, %v2343
      %v2371 = vadd.f32 %v2295, %v2347
      %v2372 = vadd.f32 %v2296, %v2343
      %v2373 = vadd.f32 %v2297, %v2347
      %v2374 = vadd.f32 %v2298, %v2343
      %v2375 = vadd.f32 %v2299, %v2347
      %v2376 = vadd.f32 %v2300, %v2343
      %v2377 = vadd.f32 %v2301, %v2347
      %v2378 = vadd.f32 %v2302, %v2343
      %v2379 = vadd.f32 %v2303, %v2347
      %v2380 = vadd.f32 %v2304, %v2343
      %v2381 = vadd.f32 %v2305, %v2347
      %v2382 = vadd.f32 %v2306, %v2343
      %v2383 = vadd.f32 %v2307, %v2347
      %v2384 = vadd.f32 %v2308, %v2343
      %v2385 = vadd.f32 %v2309, %v2347
      %v2386 = vadd.f32 %v2310, %v2343
      %v2387 = vadd.f32 %v2311, %v2347
      %v2388 = vadd.f32 %v2312, %v2343
      %v2389 = vadd.f32 %v2313, %v2347
      %v2390 = vadd.f32 %v2314, %v2343
      %v2391 = vadd.f32 %v2315, %v2347
      %v2392 = vadd.f32 %v2316, %v2343
      %v2393 = vadd.f32 %v2317, %v2347
      %v2394 = vadd.f32 %v2318, %v2343
      %v2395 = vadd.f32 %v2319, %v2347
      %v2396 = vadd.f32 %v2320, %v2343
      %v2397 = vadd.f32 %v2321, %v2347
      %v2398 = vadd.f32 %v2322, %v2343
      %v2399 = vadd.f32 %v2323, %v2347
      %v2400 = vadd.f32 %v2324, %v2343
      %v2401 = vadd.f32 %v2325, %v2347
      %v2402 = vadd.f32 %v2326, %v2343
      %v2403 = vadd.f32 %v2327, %v2347
      %v2404 = vadd.f32 %v2328, %v2343
      %v2405 = vadd.f32 %v2329, %v2347
      %v2406 = vadd.f32 %v2330, %v2343
      %v2407 = vadd.f32 %v2331, %v2347
      %v2408 = vadd.f32 %v2332, %v2343
      %v2409 = vadd.f32 %v2333, %v2347
      %v2410 = vadd.f32 %v2334, %v2343
      %v2411 = vadd.f32 %v2335, %v2347
      %v2412 = vadd.f32 %v2336, %v2343
      %v2413 = vadd.f32 %v2337, %v2347
      %v2414 = vmax.f32 %v2350, 0.0
      %v2415 = vmax.f32 %v2351, 0.0
      %v2416 = vmax.f32 %v2352, 0.0
      %v2417 = vmax.f32 %v2353, 0.0
      %v2418 = vmax.f32 %v2354, 0.0
      %v2419 = vmax.f32 %v2355, 0.0
      %v2420 = vmax.f32 %v2356, 0.0
      %v2421 = vmax.f32 %v2357, 0.0
      %v2422 = vmax.f32 %v2358, 0.0
      %v2423 = vmax.f32 %v2359, 0.0
      %v2424 = vmax.f32 %v2360, 0.0
      %v2425 = vmax.f32 %v2361, 0.0
      %v2426 = vmax.f32 %v2362, 0.0
      %v2427 = vmax.f32 %v2363, 0.0
      %v2428 = vmax.f32 %v2364, 0.0
      %v2429 = vmax.f32 %v2365, 0.0
      %v2430 = vmax.f32 %v2366, 0.0
      %v2431 = vmax.f32 %v2367, 0.0
      %v2432 = vmax.f32 %v2368, 0.0
      %v2433 = vmax.f32 %v2369, 0.0
      %v2434 = vmax.f32 %v2370, 0.0
      %v2435 = vmax.f32 %v2371, 0.0
      %v2436 = vmax.f32 %v2372, 0.0
      %v2437 = vmax.f32 %v2373, 0.0
      %v2438 = vmax.f32 %v2374, 0.0
      %v2439 = vmax.f32 %v2375, 0.0
      %v2440 = vmax.f32 %v2376, 0.0
      %v2441 = vmax.f32 %v2377, 0.0
      %v2442 = vmax.f32 %v2378, 0.0
      %v2443 = vmax.f32 %v2379, 0.0
      %v2444 = vmax.f32 %v2380, 0.0
      %v2445 = vmax.f32 %v2381, 0.0
      %v2446 = vmax.f32 %v2382, 0.0
      %v2447 = vmax.f32 %v2383, 0.0
      %v2448 = vmax.f32 %v2384, 0.0
      %v2449 = vmax.f32 %v2385, 0.0
      %v2450 = vmax.f32 %v2386, 0.0
      %v2451 = vmax.f32 %v2387, 0.0
      %v2452 = vmax.f32 %v2388, 0.0
      %v2453 = vmax.f32 %v2389, 0.0
      %v2454 = vmax.f32 %v2390, 0.0
      %v2455 = vmax.f32 %v2391, 0.0
      %v2456 = vmax.f32 %v2392, 0.0
      %v2457 = vmax.f32 %v2393, 0.0
      %v2458 = vmax.f32 %v2394, 0.0
      %v2459 = vmax.f32 %v2395, 0.0
      %v2460 = vmax.f32 %v2396, 0.0
      %v2461 = vmax.f32 %v2397, 0.0
      %v2462 = vmax.f32 %v2398, 0.0
      %v2463 = vmax.f32 %v2399, 0.0
      %v2464 = vmax.f32 %v2400, 0.0
      %v2465 = vmax.f32 %v2401, 0.0
      %v2466 = vmax.f32 %v2402, 0.0
      %v2467 = vmax.f32 %v2403, 0.0
      %v2468 = vmax.f32 %v2404, 0.0
      %v2469 = vmax.f32 %v2405, 0.0
      %v2470 = vmax.f32 %v2406, 0.0
      %v2471 = vmax.f32 %v2407, 0.0
      %v2472 = vmax.f32 %v2408, 0.0
      %v2473 = vmax.f32 %v2409, 0.0
      %v2474 = vmax.f32 %v2410, 0.0
      %v2475 = vmax.f32 %v2411, 0.0
      %v2476 = vmax.f32 %v2412, 0.0
      %v2477 = vmax.f32 %v2413, 0.0
      %v2478 = vpack.c.bf16 %v2416, %v2414
      %v2479 = vpack.c.bf16 %v2417, %v2415
      %v2480 = vpack.c.bf16 %v2420, %v2418
      %v2481 = vpack.c.bf16 %v2421, %v2419
      %v2482 = vpack.c.bf16 %v2424, %v2422
      %v2483 = vpack.c.bf16 %v2425, %v2423
      %v2484 = vpack.c.bf16 %v2428, %v2426
      %v2485 = vpack.c.bf16 %v2429, %v2427
      %v2486 = vpack.c.bf16 %v2432, %v2430
      %v2487 = vpack.c.bf16 %v2433, %v2431
      %v2488 = vpack.c.bf16 %v2436, %v2434
      %v2489 = vpack.c.bf16 %v2437, %v2435
      %v2490 = vpack.c.bf16 %v2440, %v2438
      %v2491 = vpack.c.bf16 %v2441, %v2439
      %v2492 = vpack.c.bf16 %v2444, %v2442
      %v2493 = vpack.c.bf16 %v2445, %v2443
      %v2494 = vpack.c.bf16 %v2448, %v2446
      %v2495 = vpack.c.bf16 %v2449, %v2447
      %v2496 = vpack.c.bf16 %v2452, %v2450
      %v2497 = vpack.c.bf16 %v2453, %v2451
      %v2498 = vpack.c.bf16 %v2456, %v2454
      %v2499 = vpack.c.bf16 %v2457, %v2455
      %v2500 = vpack.c.bf16 %v2460, %v2458
      %v2501 = vpack.c.bf16 %v2461, %v2459
      %v2502 = vpack.c.bf16 %v2464, %v2462
      %v2503 = vpack.c.bf16 %v2465, %v2463
      %v2504 = vpack.c.bf16 %v2468, %v2466
      %v2505 = vpack.c.bf16 %v2469, %v2467
      %v2506 = vpack.c.bf16 %v2472, %v2470
      %v2507 = vpack.c.bf16 %v2473, %v2471
      %v2508 = vpack.c.bf16 %v2476, %v2474
      %v2509 = vpack.c.bf16 %v2477, %v2475
      %v2542 = vunpack.c.l.b16 %v2478
      %v2543 = vunpack.c.h.b16 %v2478
      %v2544 = vunpack.c.l.b16 %v2479
      %v2545 = vunpack.c.h.b16 %v2479
      %v2546 = vunpack.c.l.b16 %v2480
      %v2547 = vunpack.c.h.b16 %v2480
      %v2548 = vunpack.c.l.b16 %v2481
      %v2549 = vunpack.c.h.b16 %v2481
      %v2550 = vunpack.c.l.b16 %v2482
      %v2551 = vunpack.c.h.b16 %v2482
      %v2552 = vunpack.c.l.b16 %v2483
      %v2553 = vunpack.c.h.b16 %v2483
      %v2554 = vunpack.c.l.b16 %v2484
      %v2555 = vunpack.c.h.b16 %v2484
      %v2556 = vunpack.c.l.b16 %v2485
      %v2557 = vunpack.c.h.b16 %v2485
      %v2558 = vunpack.c.l.b16 %v2486
      %v2559 = vunpack.c.h.b16 %v2486
      %v2560 = vunpack.c.l.b16 %v2487
      %v2561 = vunpack.c.h.b16 %v2487
      %v2562 = vunpack.c.l.b16 %v2488
      %v2563 = vunpack.c.h.b16 %v2488
      %v2564 = vunpack.c.l.b16 %v2489
      %v2565 = vunpack.c.h.b16 %v2489
      %v2566 = vunpack.c.l.b16 %v2490
      %v2567 = vunpack.c.h.b16 %v2490
      %v2568 = vunpack.c.l.b16 %v2491
      %v2569 = vunpack.c.h.b16 %v2491
      %v2570 = vunpack.c.l.b16 %v2492
      %v2571 = vunpack.c.h.b16 %v2492
      %v2572 = vunpack.c.l.b16 %v2493
      %v2573 = vunpack.c.h.b16 %v2493
      %v2574 = vunpack.c.l.b16 %v2494
      %v2575 = vunpack.c.h.b16 %v2494
      %v2576 = vunpack.c.l.b16 %v2495
      %v2577 = vunpack.c.h.b16 %v2495
      %v2578 = vunpack.c.l.b16 %v2496
      %v2579 = vunpack.c.h.b16 %v2496
      %v2580 = vunpack.c.l.b16 %v2497
      %v2581 = vunpack.c.h.b16 %v2497
      %v2582 = vunpack.c.l.b16 %v2498
      %v2583 = vunpack.c.h.b16 %v2498
      %v2584 = vunpack.c.l.b16 %v2499
      %v2585 = vunpack.c.h.b16 %v2499
      %v2586 = vunpack.c.l.b16 %v2500
      %v2587 = vunpack.c.h.b16 %v2500
      %v2588 = vunpack.c.l.b16 %v2501
      %v2589 = vunpack.c.h.b16 %v2501
      %v2590 = vunpack.c.l.b16 %v2502
      %v2591 = vunpack.c.h.b16 %v2502
      %v2592 = vunpack.c.l.b16 %v2503
      %v2593 = vunpack.c.h.b16 %v2503
      %v2594 = vunpack.c.l.b16 %v2504
      %v2595 = vunpack.c.h.b16 %v2504
      %v2596 = vunpack.c.l.b16 %v2505
      %v2597 = vunpack.c.h.b16 %v2505
      %v2598 = vunpack.c.l.b16 %v2506
      %v2599 = vunpack.c.h.b16 %v2506
      %v2600 = vunpack.c.l.b16 %v2507
      %v2601 = vunpack.c.h.b16 %v2507
      %v2602 = vunpack.c.l.b16 %v2508
      %v2603 = vunpack.c.h.b16 %v2508
      %v2604 = vunpack.c.l.b16 %v2509
      %v2605 = vunpack.c.h.b16 %v2509
      %v2606 = vpack.c.b16 %v2542, %v2542
      %v2607 = vpack.c.b16 %v2543, %v2543
      %v2608 = vpack.c.b16 %v2544, %v2544
      %v2609 = vpack.c.b16 %v2545, %v2545
      %v2610 = vpack.c.b16 %v2546, %v2546
      %v2611 = vpack.c.b16 %v2547, %v2547
      %v2612 = vpack.c.b16 %v2548, %v2548
      %v2613 = vpack.c.b16 %v2549, %v2549
      %v2614 = vpack.c.b16 %v2550, %v2550
      %v2615 = vpack.c.b16 %v2551, %v2551
      %v2616 = vpack.c.b16 %v2552, %v2552
      %v2617 = vpack.c.b16 %v2553, %v2553
      %v2618 = vpack.c.b16 %v2554, %v2554
      %v2619 = vpack.c.b16 %v2555, %v2555
      %v2620 = vpack.c.b16 %v2556, %v2556
      %v2621 = vpack.c.b16 %v2557, %v2557
      %v2622 = vpack.c.b16 %v2558, %v2558
      %v2623 = vpack.c.b16 %v2559, %v2559
      %v2624 = vpack.c.b16 %v2560, %v2560
      %v2625 = vpack.c.b16 %v2561, %v2561
      %v2626 = vpack.c.b16 %v2562, %v2562
      %v2627 = vpack.c.b16 %v2563, %v2563
      %v2628 = vpack.c.b16 %v2564, %v2564
      %v2629 = vpack.c.b16 %v2565, %v2565
      %v2630 = vpack.c.b16 %v2566, %v2566
      %v2631 = vpack.c.b16 %v2567, %v2567
      %v2632 = vpack.c.b16 %v2568, %v2568
      %v2633 = vpack.c.b16 %v2569, %v2569
      %v2634 = vpack.c.b16 %v2570, %v2570
      %v2635 = vpack.c.b16 %v2571, %v2571
      %v2636 = vpack.c.b16 %v2572, %v2572
      %v2637 = vpack.c.b16 %v2573, %v2573
      %v2638 = vpack.c.b16 %v2574, %v2574
      %v2639 = vpack.c.b16 %v2575, %v2575
      %v2640 = vpack.c.b16 %v2576, %v2576
      %v2641 = vpack.c.b16 %v2577, %v2577
      %v2642 = vpack.c.b16 %v2578, %v2578
      %v2643 = vpack.c.b16 %v2579, %v2579
      %v2644 = vpack.c.b16 %v2580, %v2580
      %v2645 = vpack.c.b16 %v2581, %v2581
      %v2646 = vpack.c.b16 %v2582, %v2582
      %v2647 = vpack.c.b16 %v2583, %v2583
      %v2648 = vpack.c.b16 %v2584, %v2584
      %v2649 = vpack.c.b16 %v2585, %v2585
      %v2650 = vpack.c.b16 %v2586, %v2586
      %v2651 = vpack.c.b16 %v2587, %v2587
      %v2652 = vpack.c.b16 %v2588, %v2588
      %v2653 = vpack.c.b16 %v2589, %v2589
      %v2654 = vpack.c.b16 %v2590, %v2590
      %v2655 = vpack.c.b16 %v2591, %v2591
      %v2656 = vpack.c.b16 %v2592, %v2592
      %v2657 = vpack.c.b16 %v2593, %v2593
      %v2658 = vpack.c.b16 %v2594, %v2594
      %v2659 = vpack.c.b16 %v2595, %v2595
      %v2660 = vpack.c.b16 %v2596, %v2596
      %v2661 = vpack.c.b16 %v2597, %v2597
      %v2662 = vpack.c.b16 %v2598, %v2598
      %v2663 = vpack.c.b16 %v2599, %v2599
      %v2664 = vpack.c.b16 %v2600, %v2600
      %v2665 = vpack.c.b16 %v2601, %v2601
      %v2666 = vpack.c.b16 %v2602, %v2602
      %v2667 = vpack.c.b16 %v2603, %v2603
      %v2668 = vpack.c.b16 %v2604, %v2604
      %v2669 = vpack.c.b16 %v2605, %v2605
      %2734 = vst [vmem:[%s340] sm:$0xf] %v2606
      %2735 = vst [vmem:[%s340 + $0x4] sm:$0xf] %v2607
      %2736 = vst [vmem:[%s340 + $0x8] sm:$0xf] %v2608
      %2737 = vst [vmem:[%s340 + $0xc] sm:$0xf] %v2609
      %2738 = vst [vmem:[%s340 + $0x10] sm:$0xf] %v2610
      %2739 = vst [vmem:[%s340 + $0x14] sm:$0xf] %v2611
      %2740 = vst [vmem:[%s340 + $0x18] sm:$0xf] %v2612
      %2741 = vst [vmem:[%s340 + $0x1c] sm:$0xf] %v2613
      %2742 = vst [vmem:[%s340 + $0x20] sm:$0xf] %v2614
      %2743 = vst [vmem:[%s340 + $0x24] sm:$0xf] %v2615
      %2744 = vst [vmem:[%s340 + $0x28] sm:$0xf] %v2616
      %2745 = vst [vmem:[%s340 + $0x2c] sm:$0xf] %v2617
      %2746 = vst [vmem:[%s340 + $0x30] sm:$0xf] %v2618
      %2747 = vst [vmem:[%s340 + $0x34] sm:$0xf] %v2619
      %2748 = vst [vmem:[%s340 + $0x38] sm:$0xf] %v2620
      %2749 = vst [vmem:[%s340 + $0x3c] sm:$0xf] %v2621
      %2750 = vst [vmem:[%s340 + $0x40] sm:$0xf] %v2622
      %2751 = vst [vmem:[%s340 + $0x44] sm:$0xf] %v2623
      %2752 = vst [vmem:[%s340 + $0x48] sm:$0xf] %v2624
      %2753 = vst [vmem:[%s340 + $0x4c] sm:$0xf] %v2625
      %2754 = vst [vmem:[%s340 + $0x50] sm:$0xf] %v2626
      %2755 = vst [vmem:[%s340 + $0x54] sm:$0xf] %v2627
      %2756 = vst [vmem:[%s340 + $0x58] sm:$0xf] %v2628
      %2757 = vst [vmem:[%s340 + $0x5c] sm:$0xf] %v2629
      %2758 = vst [vmem:[%s340 + $0x60] sm:$0xf] %v2630
      %2759 = vst [vmem:[%s340 + $0x64] sm:$0xf] %v2631
      %2760 = vst [vmem:[%s340 + $0x68] sm:$0xf] %v2632
      %2761 = vst [vmem:[%s340 + $0x6c] sm:$0xf] %v2633
      %2762 = vst [vmem:[%s340 + $0x70] sm:$0xf] %v2634
      %2763 = vst [vmem:[%s340 + $0x74] sm:$0xf] %v2635
      %2764 = vst [vmem:[%s340 + $0x78] sm:$0xf] %v2636
      %2765 = vst [vmem:[%s340 + $0x7c] sm:$0xf] %v2637
      %2766 = vst [vmem:[%s340 + $0x80] sm:$0xf] %v2638
      %2767 = vst [vmem:[%s340 + $0x84] sm:$0xf] %v2639
      %2768 = vst [vmem:[%s340 + $0x88] sm:$0xf] %v2640
      %2769 = vst [vmem:[%s340 + $0x8c] sm:$0xf] %v2641
      %2770 = vst [vmem:[%s340 + $0x90] sm:$0xf] %v2642
      %2771 = vst [vmem:[%s340 + $0x94] sm:$0xf] %v2643
      %2772 = vst [vmem:[%s340 + $0x98] sm:$0xf] %v2644
      %2773 = vst [vmem:[%s340 + $0x9c] sm:$0xf] %v2645
      %2774 = vst [vmem:[%s340 + $0xa0] sm:$0xf] %v2646
      %2775 = vst [vmem:[%s340 + $0xa4] sm:$0xf] %v2647
      %2776 = vst [vmem:[%s340 + $0xa8] sm:$0xf] %v2648
      %2777 = vst [vmem:[%s340 + $0xac] sm:$0xf] %v2649
      %2778 = vst [vmem:[%s340 + $0xb0] sm:$0xf] %v2650
      %2779 = vst [vmem:[%s340 + $0xb4] sm:$0xf] %v2651
      %2780 = vst [vmem:[%s340 + $0xb8] sm:$0xf] %v2652
      %2781 = vst [vmem:[%s340 + $0xbc] sm:$0xf] %v2653
      %2782 = vst [vmem:[%s340 + $0xc0] sm:$0xf] %v2654
      %2783 = vst [vmem:[%s340 + $0xc4] sm:$0xf] %v2655
      %2784 = vst [vmem:[%s340 + $0xc8] sm:$0xf] %v2656
      %2785 = vst [vmem:[%s340 + $0xcc] sm:$0xf] %v2657
      %2786 = vst [vmem:[%s340 + $0xd0] sm:$0xf] %v2658
      %2787 = vst [vmem:[%s340 + $0xd4] sm:$0xf] %v2659
      %2788 = vst [vmem:[%s340 + $0xd8] sm:$0xf] %v2660
      %2789 = vst [vmem:[%s340 + $0xdc] sm:$0xf] %v2661
      %2790 = vst [vmem:[%s340 + $0xe0] sm:$0xf] %v2662
      %2791 = vst [vmem:[%s340 + $0xe4] sm:$0xf] %v2663
      %2792 = vst [vmem:[%s340 + $0xe8] sm:$0xf] %v2664
      %2793 = vst [vmem:[%s340 + $0xec] sm:$0xf] %v2665
      %2794 = vst [vmem:[%s340 + $0xf0] sm:$0xf] %v2666
      %2795 = vst [vmem:[%s340 + $0xf4] sm:$0xf] %v2667
      %2796 = vst [vmem:[%s340 + $0xf8] sm:$0xf] %v2668
      %2797 = vst [vmem:[%s340 + $0xfc] sm:$0xf] %v2669
      %s2798 = smul.u32 16, %s21
      %p2799 = scmp.lt.s32.totalorder %s20, 1
      %s2800 = scalar_select %p2799, %s20, 1
      %p2801 = scmp.lt.s32.totalorder %s2798, 15
      %s2802 = scalar_select %p2801, %s2798, 15
      %s2803 = smul.addr %s2802, 4
      %s2804 = smul.addr %s2800, 64
      %s2805 = sadd.s32 %s2803, %s2804
      %s2806 = smul.addr %s2805, 4
      %s2807 = scalar_lea.vmem %s5, %s2806
      // Predicated region
      $region41: #{upsampler_block_forward.1} parent=39 // pred_check
        %p2808 = pneg %p171
      $region42: #{upsampler_block_forward.1} parent=39 // pred_check_branch
        %2810 = sbr.rel (%p2808) target = $region44
      $region43: #{upsampler_block_forward.1} parent=39 // pred_region
        %s2811 = smul.u32 16, %s21
      $region44: #{upsampler_block_forward.1} parent=39 // pred_fallthru
        _
    $region40: #{upsampler_block_forward.1} parent=5 // pred_fallthru
      _
    %p2812 = scmp.le.s32.totalorder 2, %s11
    // Predicated region
    $region45: #{upsampler_block_forward.1} parent=5 // pred_check
      %p2813 = pneg %p2812
    $region46: #{upsampler_block_forward.1} parent=5 // pred_check_branch
      %2815 = sbr.rel (%p2813) target = $region48
    $region47: #{upsampler_block_forward.1} parent=5 // pred_region
      %s2816 = ssub.s32 %s11, 2
      // Predicated region
      $region49: #{upsampler_block_forward.1} parent=47 // pred_check
        %p2817 = pneg %p177
      $region50: #{upsampler_block_forward.1} parent=47 // pred_check_branch
        %2819 = sbr.rel (%p2817) target = $region52
      $region51: #{upsampler_block_forward.1} parent=47 // pred_region
        %s2820 = smul.u32 16, %s23
        %p2821 = scmp.lt.s32.totalorder %s22, 1
        %s2822 = scalar_select %p2821, %s22, 1
        %p2823 = scmp.lt.s32.totalorder %s2820, 15
        %s2824 = scalar_select %p2823, %s2820, 15
        %s2825 = smul.addr %s2824, 4
        %s2826 = smul.addr %s2822, 64
        %s2827 = sadd.s32 %s2825, %s2826
        %s2828 = smul.addr %s2827, 4
        %s2829 = scalar_lea.vmem %s5, %s2828
      $region52: #{upsampler_block_forward.1} parent=47 // pred_fallthru
        _
    $region48: #{upsampler_block_forward.1} parent=5 // pred_fallthru
      _
  $region6: #{upsampler_block_forward.1} parent=0 // loop_footer
    %s15 = sadd.s32 1, %s11
  $region7: #{upsampler_block_forward.1} parent=0 // loop_footer_branch
    %10 = sbr.rel target = $region3
  $region8: #{upsampler_block_forward.1} parent=0 // loop_exit
    _

</llo_original>
